<compile_context>
chip_gen: v5e
topology: v5e:2x2
jax: 0.10.0
libtpu: 0.0.40
codegen_flags: <defaults>
</compile_context>

<pallas_src>
import functools

import jax
import jax.numpy as jnp
from jax import lax
from jax.experimental import pallas as pl
from jax.experimental.pallas import tpu as pltpu


# ----------------------------- Fused Pallas kernel ---------------------------


def _fused_kernel(kpos_ref,                      # SMEM (K, 2) filter-kernel offsets
                  pos_col_ref, posT_ref,         # (N, 2) and (2, N) input positions
                  bid_col_ref, bid_row_ref,      # (N, 1) and (1, N) int32 batch ids
                  winT_ref,                      # (C, N) input mixture weights (channels-first)
                  convw_ref,                     # (KB, C_out, C_in) conv filter chunk
                  g1_ref, b1_ref,                # (C, 1) conv_norm BatchNorm gamma/beta
                  w1T_ref, bb1_ref,              # (H, C), (H, 1) MLP linear-1
                  g2_ref, b2_ref,                # (H, 1) MLP BatchNorm gamma/beta
                  w2T_ref, bb2_ref,              # (C, H), (C, 1) MLP linear-2
                  outT_ref,                      # (C, N) output weights (channels-first)
                  *, sigma, neg_slope, eps, kb):
    step = pl.program_id(0)

    @pl.when(step == 0)
    def _():
        outT_ref[...] = jnp.zeros_like(outT_ref)

    # Conv-component geometry (conv components inherit the input positions / batch ids).
    px_col = pos_col_ref[:, 0:1]                 # (N, 1) x of conv component j
    py_col = pos_col_ref[:, 1:2]
    px_row = posT_ref[0:1, :]                    # (1, N) x of query m
    py_row = posT_ref[1:2, :]
    same_batch = bid_col_ref[...] == bid_row_ref[...]          # (N_j, N_m)
    inv_two_s2 = 1.0 / (2.0 * sigma * sigma)
    winT = winT_ref[...]                                        # (C_in, N)

    acc = jnp.zeros(outT_ref.shape, jnp.float32)                # (C_out, N_m)
    for ii in range(kb):                                        # unrolled over this chunk's kernels
        kk = step * kb + ii
        kx = kpos_ref[kk, 0]                                    # scalar offsets from SMEM
        ky = kpos_ref[kk, 1]
        # Squared distance (difference form, VPU only): conv component j vs query m.
        dx = (px_col + kx) - px_row                             # (N_j, N_m)
        dy = (py_col + ky) - py_row
        d2 = dx * dx + dy * dy                                  # >= 0 by construction
        kmat = jnp.where(same_batch, jnp.exp(-d2 * inv_two_s2), 0.0)
        # Conv weights for filter kernel kk, computed on the fly (channels-first):
        #   wcT[o, j] = sum_i W_conv[kk, i, o] * w_in[j, i]
        wcT = jnp.dot(convw_ref[ii], winT, preferred_element_type=jnp.float32)   # (C, N_j)
        # Sampled contribution: out^T[o, m] += sum_j wcT[o, j] * kmat[j, m]
        acc += jnp.dot(wcT, kmat, preferred_element_type=jnp.float32)
    outT_ref[...] += acc

    @pl.when(step == pl.num_programs(0) - 1)
    def _():
        a = outT_ref[...]                                       # (C, N) raw sampled weights
        a = jnp.where(a >= 0.0, a, neg_slope * a)               # sample nonlinearity (LeakyReLU)

        # conv_norm: BatchNorm1d(C), training-mode batch stats (lane reductions over N)
        mu = jnp.mean(a, axis=1, keepdims=True)
        var = jnp.mean((a - mu) ** 2, axis=1, keepdims=True)
        x = (a - mu) * lax.rsqrt(var + eps) * g1_ref[...] + b1_ref[...]

        # residual add of the input mixture weights
        x = x + winT

        # MLP (act_first, plain_last): Lin1 -> LeakyReLU -> BatchNorm1d(H) -> Lin2
        h = jnp.dot(w1T_ref[...], x, preferred_element_type=jnp.float32) + bb1_ref[...]   # (H, N)
        h = jnp.where(h >= 0.0, h, neg_slope * h)
        mu2 = jnp.mean(h, axis=1, keepdims=True)
        var2 = jnp.mean((h - mu2) ** 2, axis=1, keepdims=True)
        h = (h - mu2) * lax.rsqrt(var2 + eps) * g2_ref[...] + b2_ref[...]
        delta = jnp.dot(w2T_ref[...], h, preferred_element_type=jnp.float32) + bb2_ref[...]  # (C, N)

        outT_ref[...] = x + delta                               # x_out.weights (transposed)


# ------------------------------ Host wrapper ---------------------------------


def kernel_encoder_layer(positions, weights, batch_ids, params, *, sigma,
                         kernels_per_step=4):
    """Forward pass of KernelEncoderLayer (deform=False, select=None).

    positions: (N, 2) f32, weights: (N, C) f32, batch_ids: (N,) integer batch index per component.
    Returns (positions, new_weights, batch_ids).
    """
    N, C = weights.shape
    K, pos_dim = params["kernel_positions"].shape
    H = params["lin1_w"].shape[1]

    positions = positions.astype(jnp.float32)                   # (N, 2)
    weights = weights.astype(jnp.float32)                       # (N, C)
    batch_ids = batch_ids.astype(jnp.int32)                     # (N,)

    KB = min(int(kernels_per_step), K)
    assert K % KB == 0, "max_filter_kernels must be divisible by kernels_per_step"

    # Cheap host-side layout glue (tiny arrays): channels/coords-first operands for the kernel.
    posT = positions.T                                          # (2, N)
    winT = weights.T                                            # (C, N)
    bid_col = batch_ids.reshape(N, 1)
    bid_row = batch_ids.reshape(1, N)
    convwT = jnp.transpose(params["conv_weight"], (0, 2, 1)).astype(jnp.float32)  # (K, C_out, C_in)
    w1T = params["lin1_w"].T.astype(jnp.float32)                # (H, C)
    w2T = params["lin2_w"].T.astype(jnp.float32)                # (C, H)

    res2 = lambda s: (0, 0)                                     # resident 2-D blocks

    outT = pl.pallas_call(
        functools.partial(_fused_kernel, sigma=float(sigma), neg_slope=0.01,
                          eps=1e-5, kb=KB),
        grid=(K // KB,),
        in_specs=[
            pl.BlockSpec(memory_space=pltpu.MemorySpace.SMEM),   # kernel offsets (K, 2)
            pl.BlockSpec((N, pos_dim), res2),                    # positions (column form)
            pl.BlockSpec((pos_dim, N), res2),                    # positions (row form)
            pl.BlockSpec((N, 1), res2),                          # batch ids (column form)
            pl.BlockSpec((1, N), res2),                          # batch ids (row form)
            pl.BlockSpec((C, N), res2),                          # input weights^T
            pl.BlockSpec((KB, C, C), lambda s: (s, 0, 0)),       # conv filter chunk (streamed)
            pl.BlockSpec((C, 1), res2),                          # bn1 gamma
            pl.BlockSpec((C, 1), res2),                          # bn1 beta
            pl.BlockSpec((H, C), res2),                          # lin1 weight^T
            pl.BlockSpec((H, 1), res2),                          # lin1 bias
            pl.BlockSpec((H, 1), res2),                          # bn2 gamma
            pl.BlockSpec((H, 1), res2),                          # bn2 beta
            pl.BlockSpec((C, H), res2),                          # lin2 weight^T
            pl.BlockSpec((C, 1), res2),                          # lin2 bias
        ],
        out_specs=pl.BlockSpec((C, N), res2),                    # resident accumulator output
        out_shape=jax.ShapeDtypeStruct((C, N), jnp.float32),
        compiler_params=pltpu.CompilerParams(dimension_semantics=("arbitrary",)),
    )(params["kernel_positions"].astype(jnp.float32),
      positions, posT, bid_col, bid_row, winT, convwT,
      params["bn1_gamma"].reshape(C, 1), params["bn1_beta"].reshape(C, 1),
      w1T, params["lin1_b"].reshape(H, 1),
      params["bn2_gamma"].reshape(H, 1), params["bn2_beta"].reshape(H, 1),
      w2T, params["lin2_b"].reshape(C, 1))

    # deform=False -> positions unchanged; select_ratio=1.0 -> no SelectTopK.
    return positions, outT.T, batch_ids


# ------------------------------ Param init -----------------------------------


def init_params(key, *, K, C, H, sigma):
    k1, k2, k3, k4, k5 = jax.random.split(key, 5)
    side = int(round(K ** 0.5))
    assert side * side == K, "kernel_init='grid' assumes a square number of filter kernels"
    # kernel_init='grid': filter kernel offsets on a square grid scaled by the kernel spread
    g = jnp.linspace(-1.5 * sigma, 1.5 * sigma, side, dtype=jnp.float32)
    gx, gy = jnp.meshgrid(g, g, indexing="ij")
    kernel_positions = jnp.stack([gx.reshape(-1), gy.reshape(-1)], axis=-1)   # (K, 2)

    params = dict(
        kernel_positions=kernel_positions,
        conv_weight=(jax.random.normal(k1, (K, C, C), jnp.float32)
                     / jnp.sqrt(jnp.float32(K * C))),
        bn1_gamma=jnp.ones((C,), jnp.float32),
        bn1_beta=jnp.zeros((C,), jnp.float32),
        lin1_w=jax.random.normal(k2, (C, H), jnp.float32) / jnp.sqrt(jnp.float32(C)),
        lin1_b=0.01 * jax.random.normal(k3, (H,), jnp.float32),
        bn2_gamma=jnp.ones((H,), jnp.float32),
        bn2_beta=jnp.zeros((H,), jnp.float32),
        lin2_w=jax.random.normal(k4, (H, C), jnp.float32) / jnp.sqrt(jnp.float32(H)),
        lin2_b=0.01 * jax.random.normal(k5, (C,), jnp.float32),
    )
    return params


# --------------------------------- Main ---------------------------------------


if __name__ == "__main__":
    # Small shapes consistent with the module:
    #   B=2 batch elements, 8 mixture components each -> N=16, pos_dim=2,
    #   n_channels C=8, n_channels_mlp H=16, max_filter_kernels K=16 (4x4 grid), sigma=0.5
    B, N_PER, C, H, K = 2, 8, 8, 16, 16
    N = B * N_PER
    SIGMA = 0.5

    key = jax.random.PRNGKey(0)
    kp, kx, kw = jax.random.split(key, 3)

    params = init_params(kp, K=K, C=C, H=H, sigma=SIGMA)

    positions = jax.random.uniform(kx, (N, 2), jnp.float32, minval=-1.0, maxval=1.0)
    weights = jax.random.normal(kw, (N, C), jnp.float32)
    # Mixture.batch = component counts per batch element -> per-component batch index (int32)
    batch_counts = [N_PER] * B
    batch_ids = jnp.concatenate(
        [jnp.full((c,), i, jnp.int32) for i, c in enumerate(batch_counts)])

    fwd = jax.jit(functools.partial(kernel_encoder_layer, sigma=SIGMA))
    out_pos, out_w, out_bid = fwd(positions, weights, batch_ids, params)
    jax.block_until_ready((out_pos, out_w, out_bid))

    assert out_pos.shape == (N, 2) and out_w.shape == (N, C)
    assert bool(jnp.all(jnp.isfinite(out_w)))
    print("KERNEL_OK")
</pallas_src>

<mosaic_0001>
module attributes {stable_mosaic.version = 11 : i64} {
  func.func @_fused_kernel(%arg0: i32, %arg1: memref<16x2xf32, #tpu.memory_space<smem>>, %arg2: memref<16x2xf32, #tpu.memory_space<vmem>>, %arg3: memref<2x16xf32, #tpu.memory_space<vmem>>, %arg4: memref<16x1xi32, #tpu.memory_space<vmem>>, %arg5: memref<1x16xi32, #tpu.memory_space<vmem>>, %arg6: memref<8x16xf32, #tpu.memory_space<vmem>>, %arg7: memref<4x8x8xf32, #tpu.memory_space<vmem>>, %arg8: memref<8x1xf32, #tpu.memory_space<vmem>>, %arg9: memref<8x1xf32, #tpu.memory_space<vmem>>, %arg10: memref<16x8xf32, #tpu.memory_space<vmem>>, %arg11: memref<16x1xf32, #tpu.memory_space<vmem>>, %arg12: memref<16x1xf32, #tpu.memory_space<vmem>>, %arg13: memref<16x1xf32, #tpu.memory_space<vmem>>, %arg14: memref<8x16xf32, #tpu.memory_space<vmem>>, %arg15: memref<8x1xf32, #tpu.memory_space<vmem>>, %arg16: memref<8x16xf32, #tpu.memory_space<vmem>>) attributes {dimension_semantics = [#tpu.dimension_semantics<arbitrary>], iteration_bounds = array<i64: 4>, scalar_prefetch = 0 : i64, scratch_operands = 0 : i64, tpu.core_type = #tpu.core_type<tc>, window_params = [{transform_indices = @transform_0, window_bounds = array<i64: 16, 2>}, {pipeline_mode = #tpu.pipeline_mode<synchronous>, transform_indices = @transform_1, window_bounds = array<i64: 16, 2>}, {pipeline_mode = #tpu.pipeline_mode<synchronous>, transform_indices = @transform_2, window_bounds = array<i64: 2, 16>}, {pipeline_mode = #tpu.pipeline_mode<synchronous>, transform_indices = @transform_3, window_bounds = array<i64: 16, 1>}, {pipeline_mode = #tpu.pipeline_mode<synchronous>, transform_indices = @transform_4, window_bounds = array<i64: 1, 16>}, {pipeline_mode = #tpu.pipeline_mode<synchronous>, transform_indices = @transform_5, window_bounds = array<i64: 8, 16>}, {transform_indices = @transform_6, window_bounds = array<i64: 4, 8, 8>}, {pipeline_mode = #tpu.pipeline_mode<synchronous>, transform_indices = @transform_7, window_bounds = array<i64: 8, 1>}, {pipeline_mode = #tpu.pipeline_mode<synchronous>, transform_indices = @transform_8, window_bounds = array<i64: 8, 1>}, {pipeline_mode = #tpu.pipeline_mode<synchronous>, transform_indices = @transform_9, window_bounds = array<i64: 16, 8>}, {pipeline_mode = #tpu.pipeline_mode<synchronous>, transform_indices = @transform_10, window_bounds = array<i64: 16, 1>}, {pipeline_mode = #tpu.pipeline_mode<synchronous>, transform_indices = @transform_11, window_bounds = array<i64: 16, 1>}, {pipeline_mode = #tpu.pipeline_mode<synchronous>, transform_indices = @transform_12, window_bounds = array<i64: 16, 1>}, {pipeline_mode = #tpu.pipeline_mode<synchronous>, transform_indices = @transform_13, window_bounds = array<i64: 8, 16>}, {pipeline_mode = #tpu.pipeline_mode<synchronous>, transform_indices = @transform_14, window_bounds = array<i64: 8, 1>}, {pipeline_mode = #tpu.pipeline_mode<synchronous>, transform_indices = @transform_15, window_bounds = array<i64: 8, 16>}]} {
    %c0_i32 = arith.constant 0 : i32
    %0 = arith.cmpi eq, %arg0, %c0_i32 : i32
    %1 = arith.extui %0 : i1 to i32
    %c0_i32_0 = arith.constant 0 : i32
    %2 = arith.cmpi ne, %1, %c0_i32_0 : i32
    scf.if %2 {
      %cst_61 = arith.constant 0.000000e+00 : f32
      %144 = vector.broadcast %cst_61 : f32 to vector<8x16xf32>
      %c0_62 = arith.constant 0 : index
      %c0_63 = arith.constant 0 : index
      %145 = vector.load %arg16[%c0_62, %c0_63] : memref<8x16xf32, #tpu.memory_space<vmem>>, vector<8x16xf32>
      tpu.vector_store %arg16[%c0_62, %c0_63], %144 {strides = array<i32>} : memref<8x16xf32, #tpu.memory_space<vmem>>, vector<8x16xf32>,
    } else {
    }
    %c0 = arith.constant 0 : index
    %c0_1 = arith.constant 0 : index
    %3 = vector.load %arg2[%c0, %c0_1] : memref<16x2xf32, #tpu.memory_space<vmem>>, vector<16x1xf32>
    %c0_2 = arith.constant 0 : index
    %c1 = arith.constant 1 : index
    %4 = vector.load %arg2[%c0_2, %c1] : memref<16x2xf32, #tpu.memory_space<vmem>>, vector<16x1xf32>
    %c0_3 = arith.constant 0 : index
    %c0_4 = arith.constant 0 : index
    %5 = vector.load %arg3[%c0_3, %c0_4] : memref<2x16xf32, #tpu.memory_space<vmem>>, vector<1x16xf32>
    %c1_5 = arith.constant 1 : index
    %c0_6 = arith.constant 0 : index
    %6 = vector.load %arg3[%c1_5, %c0_6] : memref<2x16xf32, #tpu.memory_space<vmem>>, vector<1x16xf32>
    %c0_7 = arith.constant 0 : index
    %c0_8 = arith.constant 0 : index
    %7 = vector.load %arg4[%c0_7, %c0_8] : memref<16x1xi32, #tpu.memory_space<vmem>>, vector<16x1xi32>
    %c0_9 = arith.constant 0 : index
    %c0_10 = arith.constant 0 : index
    %8 = vector.load %arg5[%c0_9, %c0_10] : memref<1x16xi32, #tpu.memory_space<vmem>>, vector<1x16xi32>
    %9 = vector.broadcast %7 : vector<16x1xi32> to vector<16x16xi32>
    %10 = vector.broadcast %8 : vector<1x16xi32> to vector<16x16xi32>
    %11 = arith.cmpi eq, %9, %10 : vector<16x16xi32>
    %c0_11 = arith.constant 0 : index
    %c0_12 = arith.constant 0 : index
    %12 = vector.load %arg6[%c0_11, %c0_12] : memref<8x16xf32, #tpu.memory_space<vmem>>, vector<8x16xf32>
    %cst = arith.constant 0.000000e+00 : f32
    %13 = vector.broadcast %cst : f32 to vector<8x16xf32>
    %c4_i32 = arith.constant 4 : i32
    %14 = arith.muli %arg0, %c4_i32 : i32
    %c0_i32_13 = arith.constant 0 : i32
    %15 = arith.addi %14, %c0_i32_13 : i32
    %16 = arith.index_cast %15 : i32 to index
    %c0_14 = arith.constant 0 : index
    %17 = memref.load %arg1[%16, %c0_14] : memref<16x2xf32, #tpu.memory_space<smem>>
    %18 = arith.index_cast %15 : i32 to index
    %c1_15 = arith.constant 1 : index
    %19 = memref.load %arg1[%18, %c1_15] : memref<16x2xf32, #tpu.memory_space<smem>>
    %20 = vector.broadcast %17 : f32 to vector<16x1xf32>
    %21 = arith.addf %3, %20 : vector<16x1xf32>
    %22 = vector.broadcast %21 : vector<16x1xf32> to vector<16x16xf32>
    %23 = vector.broadcast %5 : vector<1x16xf32> to vector<16x16xf32>
    %24 = arith.subf %22, %23 : vector<16x16xf32>
    %25 = vector.broadcast %19 : f32 to vector<16x1xf32>
    %26 = arith.addf %4, %25 : vector<16x1xf32>
    %27 = vector.broadcast %26 : vector<16x1xf32> to vector<16x16xf32>
    %28 = vector.broadcast %6 : vector<1x16xf32> to vector<16x16xf32>
    %29 = arith.subf %27, %28 : vector<16x16xf32>
    %30 = arith.mulf %24, %24 : vector<16x16xf32>
    %31 = arith.mulf %29, %29 : vector<16x16xf32>
    %32 = arith.addf %30, %31 : vector<16x16xf32>
    %cst_16 = arith.constant 0.000000e+00 : f32
    %33 = vector.broadcast %cst_16 : f32 to vector<16x16xf32>
    %34 = arith.subf %33, %32 : vector<16x16xf32>
    %cst_17 = arith.constant 2.000000e+00 : f32
    %35 = vector.broadcast %cst_17 : f32 to vector<16x16xf32>
    %36 = arith.mulf %34, %35 : vector<16x16xf32>
    %37 = math.exp %36 : vector<16x16xf32>
    %cst_18 = arith.constant 0.000000e+00 : f32
    %38 = vector.broadcast %cst_18 : f32 to vector<16x16xf32>
    %39 = arith.select %11, %37, %38 : vector<16x16xi1>, vector<16x16xf32>
    %c0_19 = arith.constant 0 : index
    %c0_20 = arith.constant 0 : index
    %c0_21 = arith.constant 0 : index
    %40 = vector.load %arg7[%c0_19, %c0_20, %c0_21] : memref<4x8x8xf32, #tpu.memory_space<vmem>>, vector<1x8x8xf32>
    %41 = vector.shape_cast %40 : vector<1x8x8xf32> to vector<8x8xf32>
    %cst_22 = arith.constant dense<0.000000e+00> : vector<8x16xf32>
    %42 = tpu.matmul %41, %12, %cst_22 {dimension_numbers = #tpu.dot_dimension_numbers<[1], [0], [0], [1], [0, 0, 1, 1], [], []>} : vector<8x8xf32>, vector<8x16xf32>, vector<8x16xf32> -> vector<8x16xf32>
    %cst_23 = arith.constant dense<0.000000e+00> : vector<8x16xf32>
    %43 = tpu.matmul %42, %39, %cst_23 {dimension_numbers = #tpu.dot_dimension_numbers<[1], [0], [0], [1], [0, 0, 1, 1], [], []>} : vector<8x16xf32>, vector<16x16xf32>, vector<8x16xf32> -> vector<8x16xf32>
    %44 = arith.addf %13, %43 : vector<8x16xf32>
    %c4_i32_24 = arith.constant 4 : i32
    %45 = arith.muli %arg0, %c4_i32_24 : i32
    %c1_i32 = arith.constant 1 : i32
    %46 = arith.addi %45, %c1_i32 : i32
    %47 = arith.index_cast %46 : i32 to index
    %c0_25 = arith.constant 0 : index
    %48 = memref.load %arg1[%47, %c0_25] : memref<16x2xf32, #tpu.memory_space<smem>>
    %49 = arith.index_cast %46 : i32 to index
    %c1_26 = arith.constant 1 : index
    %50 = memref.load %arg1[%49, %c1_26] : memref<16x2xf32, #tpu.memory_space<smem>>
    %51 = vector.broadcast %48 : f32 to vector<16x1xf32>
    %52 = arith.addf %3, %51 : vector<16x1xf32>
    %53 = vector.broadcast %52 : vector<16x1xf32> to vector<16x16xf32>
    %54 = vector.broadcast %5 : vector<1x16xf32> to vector<16x16xf32>
    %55 = arith.subf %53, %54 : vector<16x16xf32>
    %56 = vector.broadcast %50 : f32 to vector<16x1xf32>
    %57 = arith.addf %4, %56 : vector<16x1xf32>
    %58 = vector.broadcast %57 : vector<16x1xf32> to vector<16x16xf32>
    %59 = vector.broadcast %6 : vector<1x16xf32> to vector<16x16xf32>
    %60 = arith.subf %58, %59 : vector<16x16xf32>
    %61 = arith.mulf %55, %55 : vector<16x16xf32>
    %62 = arith.mulf %60, %60 : vector<16x16xf32>
    %63 = arith.addf %61, %62 : vector<16x16xf32>
    %cst_27 = arith.constant 0.000000e+00 : f32
    %64 = vector.broadcast %cst_27 : f32 to vector<16x16xf32>
    %65 = arith.subf %64, %63 : vector<16x16xf32>
    %cst_28 = arith.constant 2.000000e+00 : f32
    %66 = vector.broadcast %cst_28 : f32 to vector<16x16xf32>
    %67 = arith.mulf %65, %66 : vector<16x16xf32>
    %68 = math.exp %67 : vector<16x16xf32>
    %cst_29 = arith.constant 0.000000e+00 : f32
    %69 = vector.broadcast %cst_29 : f32 to vector<16x16xf32>
    %70 = arith.select %11, %68, %69 : vector<16x16xi1>, vector<16x16xf32>
    %c1_30 = arith.constant 1 : index
    %c0_31 = arith.constant 0 : index
    %c0_32 = arith.constant 0 : index
    %71 = vector.load %arg7[%c1_30, %c0_31, %c0_32] : memref<4x8x8xf32, #tpu.memory_space<vmem>>, vector<1x8x8xf32>
    %72 = vector.shape_cast %71 : vector<1x8x8xf32> to vector<8x8xf32>
    %cst_33 = arith.constant dense<0.000000e+00> : vector<8x16xf32>
    %73 = tpu.matmul %72, %12, %cst_33 {dimension_numbers = #tpu.dot_dimension_numbers<[1], [0], [0], [1], [0, 0, 1, 1], [], []>} : vector<8x8xf32>, vector<8x16xf32>, vector<8x16xf32> -> vector<8x16xf32>
    %cst_34 = arith.constant dense<0.000000e+00> : vector<8x16xf32>
    %74 = tpu.matmul %73, %70, %cst_34 {dimension_numbers = #tpu.dot_dimension_numbers<[1], [0], [0], [1], [0, 0, 1, 1], [], []>} : vector<8x16xf32>, vector<16x16xf32>, vector<8x16xf32> -> vector<8x16xf32>
    %75 = arith.addf %44, %74 : vector<8x16xf32>
    %c4_i32_35 = arith.constant 4 : i32
    %76 = arith.muli %arg0, %c4_i32_35 : i32
    %c2_i32 = arith.constant 2 : i32
    %77 = arith.addi %76, %c2_i32 : i32
    %78 = arith.index_cast %77 : i32 to index
    %c0_36 = arith.constant 0 : index
    %79 = memref.load %arg1[%78, %c0_36] : memref<16x2xf32, #tpu.memory_space<smem>>
    %80 = arith.index_cast %77 : i32 to index
    %c1_37 = arith.constant 1 : index
    %81 = memref.load %arg1[%80, %c1_37] : memref<16x2xf32, #tpu.memory_space<smem>>
    %82 = vector.broadcast %79 : f32 to vector<16x1xf32>
    %83 = arith.addf %3, %82 : vector<16x1xf32>
    %84 = vector.broadcast %83 : vector<16x1xf32> to vector<16x16xf32>
    %85 = vector.broadcast %5 : vector<1x16xf32> to vector<16x16xf32>
    %86 = arith.subf %84, %85 : vector<16x16xf32>
    %87 = vector.broadcast %81 : f32 to vector<16x1xf32>
    %88 = arith.addf %4, %87 : vector<16x1xf32>
    %89 = vector.broadcast %88 : vector<16x1xf32> to vector<16x16xf32>
    %90 = vector.broadcast %6 : vector<1x16xf32> to vector<16x16xf32>
    %91 = arith.subf %89, %90 : vector<16x16xf32>
    %92 = arith.mulf %86, %86 : vector<16x16xf32>
    %93 = arith.mulf %91, %91 : vector<16x16xf32>
    %94 = arith.addf %92, %93 : vector<16x16xf32>
    %cst_38 = arith.constant 0.000000e+00 : f32
    %95 = vector.broadcast %cst_38 : f32 to vector<16x16xf32>
    %96 = arith.subf %95, %94 : vector<16x16xf32>
    %cst_39 = arith.constant 2.000000e+00 : f32
    %97 = vector.broadcast %cst_39 : f32 to vector<16x16xf32>
    %98 = arith.mulf %96, %97 : vector<16x16xf32>
    %99 = math.exp %98 : vector<16x16xf32>
    %cst_40 = arith.constant 0.000000e+00 : f32
    %100 = vector.broadcast %cst_40 : f32 to vector<16x16xf32>
    %101 = arith.select %11, %99, %100 : vector<16x16xi1>, vector<16x16xf32>
    %c2 = arith.constant 2 : index
    %c0_41 = arith.constant 0 : index
    %c0_42 = arith.constant 0 : index
    %102 = vector.load %arg7[%c2, %c0_41, %c0_42] : memref<4x8x8xf32, #tpu.memory_space<vmem>>, vector<1x8x8xf32>
    %103 = vector.shape_cast %102 : vector<1x8x8xf32> to vector<8x8xf32>
    %cst_43 = arith.constant dense<0.000000e+00> : vector<8x16xf32>
    %104 = tpu.matmul %103, %12, %cst_43 {dimension_numbers = #tpu.dot_dimension_numbers<[1], [0], [0], [1], [0, 0, 1, 1], [], []>} : vector<8x8xf32>, vector<8x16xf32>, vector<8x16xf32> -> vector<8x16xf32>
    %cst_44 = arith.constant dense<0.000000e+00> : vector<8x16xf32>
    %105 = tpu.matmul %104, %101, %cst_44 {dimension_numbers = #tpu.dot_dimension_numbers<[1], [0], [0], [1], [0, 0, 1, 1], [], []>} : vector<8x16xf32>, vector<16x16xf32>, vector<8x16xf32> -> vector<8x16xf32>
    %106 = arith.addf %75, %105 : vector<8x16xf32>
    %c4_i32_45 = arith.constant 4 : i32
    %107 = arith.muli %arg0, %c4_i32_45 : i32
    %c3_i32 = arith.constant 3 : i32
    %108 = arith.addi %107, %c3_i32 : i32
    %109 = arith.index_cast %108 : i32 to index
    %c0_46 = arith.constant 0 : index
    %110 = memref.load %arg1[%109, %c0_46] : memref<16x2xf32, #tpu.memory_space<smem>>
    %111 = arith.index_cast %108 : i32 to index
    %c1_47 = arith.constant 1 : index
    %112 = memref.load %arg1[%111, %c1_47] : memref<16x2xf32, #tpu.memory_space<smem>>
    %113 = vector.broadcast %110 : f32 to vector<16x1xf32>
    %114 = arith.addf %3, %113 : vector<16x1xf32>
    %115 = vector.broadcast %114 : vector<16x1xf32> to vector<16x16xf32>
    %116 = vector.broadcast %5 : vector<1x16xf32> to vector<16x16xf32>
    %117 = arith.subf %115, %116 : vector<16x16xf32>
    %118 = vector.broadcast %112 : f32 to vector<16x1xf32>
    %119 = arith.addf %4, %118 : vector<16x1xf32>
    %120 = vector.broadcast %119 : vector<16x1xf32> to vector<16x16xf32>
    %121 = vector.broadcast %6 : vector<1x16xf32> to vector<16x16xf32>
    %122 = arith.subf %120, %121 : vector<16x16xf32>
    %123 = arith.mulf %117, %117 : vector<16x16xf32>
    %124 = arith.mulf %122, %122 : vector<16x16xf32>
    %125 = arith.addf %123, %124 : vector<16x16xf32>
    %cst_48 = arith.constant 0.000000e+00 : f32
    %126 = vector.broadcast %cst_48 : f32 to vector<16x16xf32>
    %127 = arith.subf %126, %125 : vector<16x16xf32>
    %cst_49 = arith.constant 2.000000e+00 : f32
    %128 = vector.broadcast %cst_49 : f32 to vector<16x16xf32>
    %129 = arith.mulf %127, %128 : vector<16x16xf32>
    %130 = math.exp %129 : vector<16x16xf32>
    %cst_50 = arith.constant 0.000000e+00 : f32
    %131 = vector.broadcast %cst_50 : f32 to vector<16x16xf32>
    %132 = arith.select %11, %130, %131 : vector<16x16xi1>, vector<16x16xf32>
    %c3 = arith.constant 3 : index
    %c0_51 = arith.constant 0 : index
    %c0_52 = arith.constant 0 : index
    %133 = vector.load %arg7[%c3, %c0_51, %c0_52] : memref<4x8x8xf32, #tpu.memory_space<vmem>>, vector<1x8x8xf32>
    %134 = vector.shape_cast %133 : vector<1x8x8xf32> to vector<8x8xf32>
    %cst_53 = arith.constant dense<0.000000e+00> : vector<8x16xf32>
    %135 = tpu.matmul %134, %12, %cst_53 {dimension_numbers = #tpu.dot_dimension_numbers<[1], [0], [0], [1], [0, 0, 1, 1], [], []>} : vector<8x8xf32>, vector<8x16xf32>, vector<8x16xf32> -> vector<8x16xf32>
    %cst_54 = arith.constant dense<0.000000e+00> : vector<8x16xf32>
    %136 = tpu.matmul %135, %132, %cst_54 {dimension_numbers = #tpu.dot_dimension_numbers<[1], [0], [0], [1], [0, 0, 1, 1], [], []>} : vector<8x16xf32>, vector<16x16xf32>, vector<8x16xf32> -> vector<8x16xf32>
    %137 = arith.addf %106, %136 : vector<8x16xf32>
    %c0_55 = arith.constant 0 : index
    %c0_56 = arith.constant 0 : index
    %138 = vector.load %arg16[%c0_55, %c0_56] : memref<8x16xf32, #tpu.memory_space<vmem>>, vector<8x16xf32>
    %139 = arith.addf %138, %137 : vector<8x16xf32>
    %c0_57 = arith.constant 0 : index
    %c0_58 = arith.constant 0 : index
    %140 = vector.load %arg16[%c0_57, %c0_58] : memref<8x16xf32, #tpu.memory_space<vmem>>, vector<8x16xf32>
    tpu.vector_store %arg16[%c0_57, %c0_58], %139 {strides = array<i32>} : memref<8x16xf32, #tpu.memory_space<vmem>>, vector<8x16xf32>,
    %c3_i32_59 = arith.constant 3 : i32
    %141 = arith.cmpi eq, %arg0, %c3_i32_59 : i32
    %142 = arith.extui %141 : i1 to i32
    %c0_i32_60 = arith.constant 0 : i32
    %143 = arith.cmpi ne, %142, %c0_i32_60 : i32
    scf.if %143 {
      %c0_61 = arith.constant 0 : index
      %c0_62 = arith.constant 0 : index
      %144 = vector.load %arg16[%c0_61, %c0_62] : memref<8x16xf32, #tpu.memory_space<vmem>>, vector<8x16xf32>
      %cst_63 = arith.constant 0.000000e+00 : f32
      %145 = vector.broadcast %cst_63 : f32 to vector<8x16xf32>
      %146 = arith.cmpf oge, %144, %145 : vector<8x16xf32>
      %cst_64 = arith.constant 0.00999999977 : f32
      %147 = vector.broadcast %cst_64 : f32 to vector<8x16xf32>
      %148 = arith.mulf %147, %144 : vector<8x16xf32>
      %149 = arith.select %146, %144, %148 : vector<8x16xi1>, vector<8x16xf32>
      %cst_65 = arith.constant dense<0.000000e+00> : vector<8xf32>
      %150 = vector.multi_reduction <add>, %149, %cst_65 [1] : vector<8x16xf32> to vector<8xf32>
      %151 = vector.shape_cast %150 : vector<8xf32> to vector<8x1xf32>
      %cst_66 = arith.constant 1.600000e+01 : f32
      %152 = vector.broadcast %cst_66 : f32 to vector<8x1xf32>
      %153 = arith.divf %151, %152 : vector<8x1xf32>
      %154 = vector.broadcast %153 : vector<8x1xf32> to vector<8x16xf32>
      %155 = arith.subf %149, %154 : vector<8x16xf32>
      %156 = arith.mulf %155, %155 : vector<8x16xf32>
      %cst_67 = arith.constant dense<0.000000e+00> : vector<8xf32>
      %157 = vector.multi_reduction <add>, %156, %cst_67 [1] : vector<8x16xf32> to vector<8xf32>
      %158 = vector.shape_cast %157 : vector<8xf32> to vector<8x1xf32>
      %cst_68 = arith.constant 1.600000e+01 : f32
      %159 = vector.broadcast %cst_68 : f32 to vector<8x1xf32>
      %160 = arith.divf %158, %159 : vector<8x1xf32>
      %161 = vector.broadcast %153 : vector<8x1xf32> to vector<8x16xf32>
      %162 = arith.subf %149, %161 : vector<8x16xf32>
      %cst_69 = arith.constant 9.99999974E-6 : f32
      %163 = vector.broadcast %cst_69 : f32 to vector<8x1xf32>
      %164 = arith.addf %160, %163 : vector<8x1xf32>
      %165 = math.rsqrt %164 : vector<8x1xf32>
      %166 = vector.broadcast %165 : vector<8x1xf32> to vector<8x16xf32>
      %167 = arith.mulf %162, %166 : vector<8x16xf32>
      %c0_70 = arith.constant 0 : index
      %c0_71 = arith.constant 0 : index
      %168 = vector.load %arg8[%c0_70, %c0_71] : memref<8x1xf32, #tpu.memory_space<vmem>>, vector<8x1xf32>
      %169 = vector.broadcast %168 : vector<8x1xf32> to vector<8x16xf32>
      %170 = arith.mulf %167, %169 : vector<8x16xf32>
      %c0_72 = arith.constant 0 : index
      %c0_73 = arith.constant 0 : index
      %171 = vector.load %arg9[%c0_72, %c0_73] : memref<8x1xf32, #tpu.memory_space<vmem>>, vector<8x1xf32>
      %172 = vector.broadcast %171 : vector<8x1xf32> to vector<8x16xf32>
      %173 = arith.addf %170, %172 : vector<8x16xf32>
      %174 = arith.addf %173, %12 : vector<8x16xf32>
      %c0_74 = arith.constant 0 : index
      %c0_75 = arith.constant 0 : index
      %175 = vector.load %arg10[%c0_74, %c0_75] : memref<16x8xf32, #tpu.memory_space<vmem>>, vector<16x8xf32>
      %cst_76 = arith.constant dense<0.000000e+00> : vector<16x16xf32>
      %176 = tpu.matmul %175, %174, %cst_76 {dimension_numbers = #tpu.dot_dimension_numbers<[1], [0], [0], [1], [0, 0, 1, 1], [], []>} : vector<16x8xf32>, vector<8x16xf32>, vector<16x16xf32> -> vector<16x16xf32>
      %c0_77 = arith.constant 0 : index
      %c0_78 = arith.constant 0 : index
      %177 = vector.load %arg11[%c0_77, %c0_78] : memref<16x1xf32, #tpu.memory_space<vmem>>, vector<16x1xf32>
      %178 = vector.broadcast %177 : vector<16x1xf32> to vector<16x16xf32>
      %179 = arith.addf %176, %178 : vector<16x16xf32>
      %cst_79 = arith.constant 0.000000e+00 : f32
      %180 = vector.broadcast %cst_79 : f32 to vector<16x16xf32>
      %181 = arith.cmpf oge, %179, %180 : vector<16x16xf32>
      %cst_80 = arith.constant 0.00999999977 : f32
      %182 = vector.broadcast %cst_80 : f32 to vector<16x16xf32>
      %183 = arith.mulf %182, %179 : vector<16x16xf32>
      %184 = arith.select %181, %179, %183 : vector<16x16xi1>, vector<16x16xf32>
      %cst_81 = arith.constant dense<0.000000e+00> : vector<16xf32>
      %185 = vector.multi_reduction <add>, %184, %cst_81 [1] : vector<16x16xf32> to vector<16xf32>
      %186 = vector.shape_cast %185 : vector<16xf32> to vector<16x1xf32>
      %cst_82 = arith.constant 1.600000e+01 : f32
      %187 = vector.broadcast %cst_82 : f32 to vector<16x1xf32>
      %188 = arith.divf %186, %187 : vector<16x1xf32>
      %189 = vector.broadcast %188 : vector<16x1xf32> to vector<16x16xf32>
      %190 = arith.subf %184, %189 : vector<16x16xf32>
      %191 = arith.mulf %190, %190 : vector<16x16xf32>
      %cst_83 = arith.constant dense<0.000000e+00> : vector<16xf32>
      %192 = vector.multi_reduction <add>, %191, %cst_83 [1] : vector<16x16xf32> to vector<16xf32>
      %193 = vector.shape_cast %192 : vector<16xf32> to vector<16x1xf32>
      %cst_84 = arith.constant 1.600000e+01 : f32
      %194 = vector.broadcast %cst_84 : f32 to vector<16x1xf32>
      %195 = arith.divf %193, %194 : vector<16x1xf32>
      %196 = vector.broadcast %188 : vector<16x1xf32> to vector<16x16xf32>
      %197 = arith.subf %184, %196 : vector<16x16xf32>
      %cst_85 = arith.constant 9.99999974E-6 : f32
      %198 = vector.broadcast %cst_85 : f32 to vector<16x1xf32>
      %199 = arith.addf %195, %198 : vector<16x1xf32>
      %200 = math.rsqrt %199 : vector<16x1xf32>
      %201 = vector.broadcast %200 : vector<16x1xf32> to vector<16x16xf32>
      %202 = arith.mulf %197, %201 : vector<16x16xf32>
      %c0_86 = arith.constant 0 : index
      %c0_87 = arith.constant 0 : index
      %203 = vector.load %arg12[%c0_86, %c0_87] : memref<16x1xf32, #tpu.memory_space<vmem>>, vector<16x1xf32>
      %204 = vector.broadcast %203 : vector<16x1xf32> to vector<16x16xf32>
      %205 = arith.mulf %202, %204 : vector<16x16xf32>
      %c0_88 = arith.constant 0 : index
      %c0_89 = arith.constant 0 : index
      %206 = vector.load %arg13[%c0_88, %c0_89] : memref<16x1xf32, #tpu.memory_space<vmem>>, vector<16x1xf32>
      %207 = vector.broadcast %206 : vector<16x1xf32> to vector<16x16xf32>
      %208 = arith.addf %205, %207 : vector<16x16xf32>
      %c0_90 = arith.constant 0 : index
      %c0_91 = arith.constant 0 : index
      %209 = vector.load %arg14[%c0_90, %c0_91] : memref<8x16xf32, #tpu.memory_space<vmem>>, vector<8x16xf32>
      %cst_92 = arith.constant dense<0.000000e+00> : vector<8x16xf32>
      %210 = tpu.matmul %209, %208, %cst_92 {dimension_numbers = #tpu.dot_dimension_numbers<[1], [0], [0], [1], [0, 0, 1, 1], [], []>} : vector<8x16xf32>, vector<16x16xf32>, vector<8x16xf32> -> vector<8x16xf32>
      %c0_93 = arith.constant 0 : index
      %c0_94 = arith.constant 0 : index
      %211 = vector.load %arg15[%c0_93, %c0_94] : memref<8x1xf32, #tpu.memory_space<vmem>>, vector<8x1xf32>
      %212 = vector.broadcast %211 : vector<8x1xf32> to vector<8x16xf32>
      %213 = arith.addf %210, %212 : vector<8x16xf32>
      %214 = arith.addf %174, %213 : vector<8x16xf32>
      %c0_95 = arith.constant 0 : index
      %c0_96 = arith.constant 0 : index
      %215 = vector.load %arg16[%c0_95, %c0_96] : memref<8x16xf32, #tpu.memory_space<vmem>>, vector<8x16xf32>
      tpu.vector_store %arg16[%c0_95, %c0_96], %214 {strides = array<i32>} : memref<8x16xf32, #tpu.memory_space<vmem>>, vector<8x16xf32>,
    } else {
    }
    return
  }
  func.func @transform_0(%arg0: i32) -> (i32, i32) {
    %c0_i32 = arith.constant 0 : i32
    %c0_i32_0 = arith.constant 0 : i32
    %c0_i32_1 = arith.constant 0 : i32
    return %c0_i32, %c0_i32_0 : i32, i32
  }
  func.func @transform_1(%arg0: i32) -> (i32, i32) {
    %c0_i32 = arith.constant 0 : i32
    %c0_i32_0 = arith.constant 0 : i32
    %c0_i32_1 = arith.constant 0 : i32
    return %c0_i32, %c0_i32_0 : i32, i32
  }
  func.func @transform_2(%arg0: i32) -> (i32, i32) {
    %c0_i32 = arith.constant 0 : i32
    %c0_i32_0 = arith.constant 0 : i32
    %c0_i32_1 = arith.constant 0 : i32
    return %c0_i32, %c0_i32_0 : i32, i32
  }
  func.func @transform_3(%arg0: i32) -> (i32, i32) {
    %c0_i32 = arith.constant 0 : i32
    %c0_i32_0 = arith.constant 0 : i32
    %c0_i32_1 = arith.constant 0 : i32
    return %c0_i32, %c0_i32_0 : i32, i32
  }
  func.func @transform_4(%arg0: i32) -> (i32, i32) {
    %c0_i32 = arith.constant 0 : i32
    %c0_i32_0 = arith.constant 0 : i32
    %c0_i32_1 = arith.constant 0 : i32
    return %c0_i32, %c0_i32_0 : i32, i32
  }
  func.func @transform_5(%arg0: i32) -> (i32, i32) {
    %c0_i32 = arith.constant 0 : i32
    %c0_i32_0 = arith.constant 0 : i32
    %c0_i32_1 = arith.constant 0 : i32
    return %c0_i32, %c0_i32_0 : i32, i32
  }
  func.func @transform_6(%arg0: i32) -> (i32, i32, i32) {
    %c0_i32 = arith.constant 0 : i32
    %c0_i32_0 = arith.constant 0 : i32
    %c0_i32_1 = arith.constant 0 : i32
    return %arg0, %c0_i32, %c0_i32_0 : i32, i32, i32
  }
  func.func @transform_7(%arg0: i32) -> (i32, i32) {
    %c0_i32 = arith.constant 0 : i32
    %c0_i32_0 = arith.constant 0 : i32
    %c0_i32_1 = arith.constant 0 : i32
    return %c0_i32, %c0_i32_0 : i32, i32
  }
  func.func @transform_8(%arg0: i32) -> (i32, i32) {
    %c0_i32 = arith.constant 0 : i32
    %c0_i32_0 = arith.constant 0 : i32
    %c0_i32_1 = arith.constant 0 : i32
    return %c0_i32, %c0_i32_0 : i32, i32
  }
  func.func @transform_9(%arg0: i32) -> (i32, i32) {
    %c0_i32 = arith.constant 0 : i32
    %c0_i32_0 = arith.constant 0 : i32
    %c0_i32_1 = arith.constant 0 : i32
    return %c0_i32, %c0_i32_0 : i32, i32
  }
  func.func @transform_10(%arg0: i32) -> (i32, i32) {
    %c0_i32 = arith.constant 0 : i32
    %c0_i32_0 = arith.constant 0 : i32
    %c0_i32_1 = arith.constant 0 : i32
    return %c0_i32, %c0_i32_0 : i32, i32
  }
  func.func @transform_11(%arg0: i32) -> (i32, i32) {
    %c0_i32 = arith.constant 0 : i32
    %c0_i32_0 = arith.constant 0 : i32
    %c0_i32_1 = arith.constant 0 : i32
    return %c0_i32, %c0_i32_0 : i32, i32
  }
  func.func @transform_12(%arg0: i32) -> (i32, i32) {
    %c0_i32 = arith.constant 0 : i32
    %c0_i32_0 = arith.constant 0 : i32
    %c0_i32_1 = arith.constant 0 : i32
    return %c0_i32, %c0_i32_0 : i32, i32
  }
  func.func @transform_13(%arg0: i32) -> (i32, i32) {
    %c0_i32 = arith.constant 0 : i32
    %c0_i32_0 = arith.constant 0 : i32
    %c0_i32_1 = arith.constant 0 : i32
    return %c0_i32, %c0_i32_0 : i32, i32
  }
  func.func @transform_14(%arg0: i32) -> (i32, i32) {
    %c0_i32 = arith.constant 0 : i32
    %c0_i32_0 = arith.constant 0 : i32
    %c0_i32_1 = arith.constant 0 : i32
    return %c0_i32, %c0_i32_0 : i32, i32
  }
  func.func @transform_15(%arg0: i32) -> (i32, i32) {
    %c0_i32 = arith.constant 0 : i32
    %c0_i32_0 = arith.constant 0 : i32
    %c0_i32_1 = arith.constant 0 : i32
    return %c0_i32, %c0_i32_0 : i32, i32
  }
}

</mosaic_0001>

<llo_original>
// kernel: kernel_encoder_layer.1
$region0: #{kernel_encoder_layer.1}
  #allocation0 [shape = 'u32[]', space=smem, size = 0x4, offset = 0x4, fixed_abs, tag = 'smem constant byte address 0x4 - core index']
  #allocation1 [shape = 'u32[72,128]{1,0:T(1,128)}', space=vmem, size = 0x9000, scoped, tag = 'internal scratch']
  %s0 = inlined_call_operand.vmem [shape: f32[16,2], index: 0, kind: input, shape index: {}]
  %s1 = inlined_call_operand.vmem [shape: f32[16,2], index: 1, kind: input, shape index: {}]
  %s2 = inlined_call_operand.vmem [shape: f32[2,16], index: 2, kind: input, shape index: {}]
  %s3 = inlined_call_operand.vmem [shape: s32[16,1], index: 3, kind: input, shape index: {}]
  %s4 = inlined_call_operand.vmem [shape: s32[1,16], index: 4, kind: input, shape index: {}]
  %s5 = inlined_call_operand.vmem [shape: f32[8,16], index: 5, kind: input, shape index: {}]
  %s6 = inlined_call_operand.vmem [shape: f32[16,8,8], index: 6, kind: input, shape index: {}]
  %s7 = inlined_call_operand.vmem [shape: f32[8,1], index: 7, kind: input, shape index: {}]
  %s8 = inlined_call_operand.vmem [shape: f32[8,1], index: 8, kind: input, shape index: {}]
  %s9 = inlined_call_operand.vmem [shape: f32[16,8], index: 9, kind: input, shape index: {}]
  %s10 = inlined_call_operand.vmem [shape: f32[16,1], index: 10, kind: input, shape index: {}]
  %s11 = inlined_call_operand.vmem [shape: f32[16,1], index: 11, kind: input, shape index: {}]
  %s12 = inlined_call_operand.vmem [shape: f32[16,1], index: 12, kind: input, shape index: {}]
  %s13 = inlined_call_operand.vmem [shape: f32[8,16], index: 13, kind: input, shape index: {}]
  %s14 = inlined_call_operand.vmem [shape: f32[8,1], index: 14, kind: input, shape index: {}]
  %s15 = inlined_call_operand.hbm [shape: f32[8,16], index: 15, kind: output, shape index: {}]
  %s16 = sld [smem:[#allocation0]]
  $region105: #{kernel_encoder_layer.1} parent=0
    _
  %s18 = ssub.s32 1, %s16
  %s19 = scalar_select 0, %s18, %s16
  $region1: #{kernel_encoder_layer.1} parent=0
    #allocation2 [shape = 'u8[8192]{0}', space=smem, size = 0x2000, scoped, tag = 'input window, operand 0, single buffered']
    #allocation3 [shape = 's32[2]{0}', space=sflag, size = 0x8, scoped, tag = 'scoped memory for kernel_encoder_layer.1']
    #allocation4 [shape = 's32[2]{0}', space=sflag, size = 0x8, scoped, tag = 'scoped memory for kernel_encoder_layer.1']
    #allocation5 [shape = 'u8[4096]{0}', space=vmem, size = 0x1000, scoped, tag = 'output window, operand 0, single buffered']
    %20 = vsyncpa [#allocation4], 0
    %21 = vsyncpa [#allocation3], 0
    loop: start=0, step=1, limit=6
    $region2: #{kernel_encoder_layer.1} parent=1 // loop_pre_header
      _
    $region3: #{kernel_encoder_layer.1} parent=1 // loop_header
      %s23 = sphi 0, %s27
      %p24 = scmp.ge.s32.totalorder %s23, 6
      %s31 = sphi 0, %s31
      %s33 = sphi 0, %s31
      %s34 = sphi 0, %s33
      %s48 = sphi 0, %s34
      %s52 = sphi 0, %s52
      %s54 = sphi 0, %s52
      %s55 = sphi 0, %s54
      %s69 = sphi 0, %s55
      %s73 = sphi 0, %s73
      %s75 = sphi 0, %s73
      %s76 = sphi 0, %s75
      %s90 = sphi 0, %s76
      %s94 = sphi 0, %s94
      %s96 = sphi 0, %s94
      %s97 = sphi 0, %s96
      %s111 = sphi 0, %s97
      %s115 = sphi 0, %s115
      %s117 = sphi 0, %s115
      %s118 = sphi 0, %s117
      %s132 = sphi 0, %s118
      %s136 = sphi 0, %s136
      %s138 = sphi 0, %s136
      %s139 = sphi 0, %s138
      %s153 = sphi 0, %s139
      %s159 = sphi 0, %s161
      %s162 = sphi 0, %s159
      %s163 = sphi 0, %s162
      %s179 = sphi 0, %s163
      %s183 = sphi 0, %s183
      %s185 = sphi 0, %s183
      %s186 = sphi 0, %s185
      %s200 = sphi 0, %s186
      %s204 = sphi 0, %s204
      %s206 = sphi 0, %s204
      %s207 = sphi 0, %s206
      %s221 = sphi 0, %s207
      %s225 = sphi 0, %s225
      %s227 = sphi 0, %s225
      %s228 = sphi 0, %s227
      %s242 = sphi 0, %s228
      %s246 = sphi 0, %s246
      %s248 = sphi 0, %s246
      %s249 = sphi 0, %s248
      %s263 = sphi 0, %s249
      %s267 = sphi 0, %s267
      %s269 = sphi 0, %s267
      %s270 = sphi 0, %s269
      %s284 = sphi 0, %s270
      %s288 = sphi 0, %s288
      %s290 = sphi 0, %s288
      %s291 = sphi 0, %s290
      %s305 = sphi 0, %s291
      %s309 = sphi 0, %s309
      %s311 = sphi 0, %s309
      %s312 = sphi 0, %s311
      %s326 = sphi 0, %s312
      %s330 = sphi 0, %s330
      %s332 = sphi 0, %s330
      %s333 = sphi 0, %s332
      %s347 = sphi 0, %s333
      %s351 = sphi 0, %s351
      %s353 = sphi 0, %s351
      %s354 = sphi 0, %s353
      %s368 = sphi 0, %s354
    $region4: #{kernel_encoder_layer.1} parent=1 // loop_header_branch
      %26 = sbr.rel (%p24) target = $region8
    $region5: #{kernel_encoder_layer.1} parent=1 // loop_body
      %s28 = ssub.s32 %s23, 1
      %s29 = ssub.s32 %s23, 2
      %s30 = sadd.s32 %s23, 1
      %s32 = sadd.s32 %s31, 1
      %p35 = scmp.eq.s32.totalorder %s23, 3
      %p36 = scmp.ne.s32.totalorder %s31, %s33
      %p37 = scmp.eq.s32.totalorder %s23, 0
      %p38 = por %p36, %p37
      %p39 = scmp.ne.s32.totalorder %s31, %s33
      %p40 = scmp.eq.s32.totalorder %s28, 3
      %p41 = por %p39, %p40
      %p42 = scmp.ne.s32.totalorder %s33, %s34
      %p43 = scmp.eq.s32.totalorder %s28, 0
      %p44 = por %p42, %p43
      %p45 = scmp.ne.s32.totalorder %s33, %s34
      %p46 = scmp.eq.s32.totalorder %s29, 3
      %p47 = por %p45, %p46
      %p49 = scmp.ne.s32.totalorder %s34, %s48
      %p50 = scmp.eq.s32.totalorder %s29, 0
      %p51 = por %p49, %p50
      %s53 = sadd.s32 %s52, 1
      %p56 = scmp.eq.s32.totalorder %s23, 3
      %p57 = scmp.ne.s32.totalorder %s52, %s54
      %p58 = scmp.eq.s32.totalorder %s23, 0
      %p59 = por %p57, %p58
      %p60 = scmp.ne.s32.totalorder %s52, %s54
      %p61 = scmp.eq.s32.totalorder %s28, 3
      %p62 = por %p60, %p61
      %p63 = scmp.ne.s32.totalorder %s54, %s55
      %p64 = scmp.eq.s32.totalorder %s28, 0
      %p65 = por %p63, %p64
      %p66 = scmp.ne.s32.totalorder %s54, %s55
      %p67 = scmp.eq.s32.totalorder %s29, 3
      %p68 = por %p66, %p67
      %p70 = scmp.ne.s32.totalorder %s55, %s69
      %p71 = scmp.eq.s32.totalorder %s29, 0
      %p72 = por %p70, %p71
      %s74 = sadd.s32 %s73, 1
      %p77 = scmp.eq.s32.totalorder %s23, 3
      %p78 = scmp.ne.s32.totalorder %s73, %s75
      %p79 = scmp.eq.s32.totalorder %s23, 0
      %p80 = por %p78, %p79
      %p81 = scmp.ne.s32.totalorder %s73, %s75
      %p82 = scmp.eq.s32.totalorder %s28, 3
      %p83 = por %p81, %p82
      %p84 = scmp.ne.s32.totalorder %s75, %s76
      %p85 = scmp.eq.s32.totalorder %s28, 0
      %p86 = por %p84, %p85
      %p87 = scmp.ne.s32.totalorder %s75, %s76
      %p88 = scmp.eq.s32.totalorder %s29, 3
      %p89 = por %p87, %p88
      %p91 = scmp.ne.s32.totalorder %s76, %s90
      %p92 = scmp.eq.s32.totalorder %s29, 0
      %p93 = por %p91, %p92
      %s95 = sadd.s32 %s94, 1
      %p98 = scmp.eq.s32.totalorder %s23, 3
      %p99 = scmp.ne.s32.totalorder %s94, %s96
      %p100 = scmp.eq.s32.totalorder %s23, 0
      %p101 = por %p99, %p100
      %p102 = scmp.ne.s32.totalorder %s94, %s96
      %p103 = scmp.eq.s32.totalorder %s28, 3
      %p104 = por %p102, %p103
      %p105 = scmp.ne.s32.totalorder %s96, %s97
      %p106 = scmp.eq.s32.totalorder %s28, 0
      %p107 = por %p105, %p106
      %p108 = scmp.ne.s32.totalorder %s96, %s97
      %p109 = scmp.eq.s32.totalorder %s29, 3
      %p110 = por %p108, %p109
      %p112 = scmp.ne.s32.totalorder %s97, %s111
      %p113 = scmp.eq.s32.totalorder %s29, 0
      %p114 = por %p112, %p113
      %s116 = sadd.s32 %s115, 1
      %p119 = scmp.eq.s32.totalorder %s23, 3
      %p120 = scmp.ne.s32.totalorder %s115, %s117
      %p121 = scmp.eq.s32.totalorder %s23, 0
      %p122 = por %p120, %p121
      %p123 = scmp.ne.s32.totalorder %s115, %s117
      %p124 = scmp.eq.s32.totalorder %s28, 3
      %p125 = por %p123, %p124
      %p126 = scmp.ne.s32.totalorder %s117, %s118
      %p127 = scmp.eq.s32.totalorder %s28, 0
      %p128 = por %p126, %p127
      %p129 = scmp.ne.s32.totalorder %s117, %s118
      %p130 = scmp.eq.s32.totalorder %s29, 3
      %p131 = por %p129, %p130
      %p133 = scmp.ne.s32.totalorder %s118, %s132
      %p134 = scmp.eq.s32.totalorder %s29, 0
      %p135 = por %p133, %p134
      %s137 = sadd.s32 %s136, 1
      %p140 = scmp.eq.s32.totalorder %s23, 3
      %p141 = scmp.ne.s32.totalorder %s136, %s138
      %p142 = scmp.eq.s32.totalorder %s23, 0
      %p143 = por %p141, %p142
      %p144 = scmp.ne.s32.totalorder %s136, %s138
      %p145 = scmp.eq.s32.totalorder %s28, 3
      %p146 = por %p144, %p145
      %p147 = scmp.ne.s32.totalorder %s138, %s139
      %p148 = scmp.eq.s32.totalorder %s28, 0
      %p149 = por %p147, %p148
      %p150 = scmp.ne.s32.totalorder %s138, %s139
      %p151 = scmp.eq.s32.totalorder %s29, 3
      %p152 = por %p150, %p151
      %p154 = scmp.ne.s32.totalorder %s139, %s153
      %p155 = scmp.eq.s32.totalorder %s29, 0
      %p156 = por %p154, %p155
      %s157 = ssub.s32 %s23, %s30
      %p158 = scmp.eq.s32.totalorder %s157, 0
      %s160 = sadd.s32 %s159, 1
      %s161 = scalar_select %p158, %s159, %s160
      %p164 = pneg %p158
      %p165 = scmp.eq.s32.totalorder %s23, 3
      %p166 = por %p164, %p165
      %p167 = scmp.ne.s32.totalorder %s159, %s162
      %p168 = scmp.eq.s32.totalorder %s23, 0
      %p169 = por %p167, %p168
      %p170 = scmp.ne.s32.totalorder %s159, %s162
      %p171 = scmp.eq.s32.totalorder %s28, 3
      %p172 = por %p170, %p171
      %p173 = scmp.ne.s32.totalorder %s162, %s163
      %p174 = scmp.eq.s32.totalorder %s28, 0
      %p175 = por %p173, %p174
      %p176 = scmp.ne.s32.totalorder %s162, %s163
      %p177 = scmp.eq.s32.totalorder %s29, 3
      %p178 = por %p176, %p177
      %p180 = scmp.ne.s32.totalorder %s163, %s179
      %p181 = scmp.eq.s32.totalorder %s29, 0
      %p182 = por %p180, %p181
      %s184 = sadd.s32 %s183, 1
      %p187 = scmp.eq.s32.totalorder %s23, 3
      %p188 = scmp.ne.s32.totalorder %s183, %s185
      %p189 = scmp.eq.s32.totalorder %s23, 0
      %p190 = por %p188, %p189
      %p191 = scmp.ne.s32.totalorder %s183, %s185
      %p192 = scmp.eq.s32.totalorder %s28, 3
      %p193 = por %p191, %p192
      %p194 = scmp.ne.s32.totalorder %s185, %s186
      %p195 = scmp.eq.s32.totalorder %s28, 0
      %p196 = por %p194, %p195
      %p197 = scmp.ne.s32.totalorder %s185, %s186
      %p198 = scmp.eq.s32.totalorder %s29, 3
      %p199 = por %p197, %p198
      %p201 = scmp.ne.s32.totalorder %s186, %s200
      %p202 = scmp.eq.s32.totalorder %s29, 0
      %p203 = por %p201, %p202
      %s205 = sadd.s32 %s204, 1
      %p208 = scmp.eq.s32.totalorder %s23, 3
      %p209 = scmp.ne.s32.totalorder %s204, %s206
      %p210 = scmp.eq.s32.totalorder %s23, 0
      %p211 = por %p209, %p210
      %p212 = scmp.ne.s32.totalorder %s204, %s206
      %p213 = scmp.eq.s32.totalorder %s28, 3
      %p214 = por %p212, %p213
      %p215 = scmp.ne.s32.totalorder %s206, %s207
      %p216 = scmp.eq.s32.totalorder %s28, 0
      %p217 = por %p215, %p216
      %p218 = scmp.ne.s32.totalorder %s206, %s207
      %p219 = scmp.eq.s32.totalorder %s29, 3
      %p220 = por %p218, %p219
      %p222 = scmp.ne.s32.totalorder %s207, %s221
      %p223 = scmp.eq.s32.totalorder %s29, 0
      %p224 = por %p222, %p223
      %s226 = sadd.s32 %s225, 1
      %p229 = scmp.eq.s32.totalorder %s23, 3
      %p230 = scmp.ne.s32.totalorder %s225, %s227
      %p231 = scmp.eq.s32.totalorder %s23, 0
      %p232 = por %p230, %p231
      %p233 = scmp.ne.s32.totalorder %s225, %s227
      %p234 = scmp.eq.s32.totalorder %s28, 3
      %p235 = por %p233, %p234
      %p236 = scmp.ne.s32.totalorder %s227, %s228
      %p237 = scmp.eq.s32.totalorder %s28, 0
      %p238 = por %p236, %p237
      %p239 = scmp.ne.s32.totalorder %s227, %s228
      %p240 = scmp.eq.s32.totalorder %s29, 3
      %p241 = por %p239, %p240
      %p243 = scmp.ne.s32.totalorder %s228, %s242
      %p244 = scmp.eq.s32.totalorder %s29, 0
      %p245 = por %p243, %p244
      %s247 = sadd.s32 %s246, 1
      %p250 = scmp.eq.s32.totalorder %s23, 3
      %p251 = scmp.ne.s32.totalorder %s246, %s248
      %p252 = scmp.eq.s32.totalorder %s23, 0
      %p253 = por %p251, %p252
      %p254 = scmp.ne.s32.totalorder %s246, %s248
      %p255 = scmp.eq.s32.totalorder %s28, 3
      %p256 = por %p254, %p255
      %p257 = scmp.ne.s32.totalorder %s248, %s249
      %p258 = scmp.eq.s32.totalorder %s28, 0
      %p259 = por %p257, %p258
      %p260 = scmp.ne.s32.totalorder %s248, %s249
      %p261 = scmp.eq.s32.totalorder %s29, 3
      %p262 = por %p260, %p261
      %p264 = scmp.ne.s32.totalorder %s249, %s263
      %p265 = scmp.eq.s32.totalorder %s29, 0
      %p266 = por %p264, %p265
      %s268 = sadd.s32 %s267, 1
      %p271 = scmp.eq.s32.totalorder %s23, 3
      %p272 = scmp.ne.s32.totalorder %s267, %s269
      %p273 = scmp.eq.s32.totalorder %s23, 0
      %p274 = por %p272, %p273
      %p275 = scmp.ne.s32.totalorder %s267, %s269
      %p276 = scmp.eq.s32.totalorder %s28, 3
      %p277 = por %p275, %p276
      %p278 = scmp.ne.s32.totalorder %s269, %s270
      %p279 = scmp.eq.s32.totalorder %s28, 0
      %p280 = por %p278, %p279
      %p281 = scmp.ne.s32.totalorder %s269, %s270
      %p282 = scmp.eq.s32.totalorder %s29, 3
      %p283 = por %p281, %p282
      %p285 = scmp.ne.s32.totalorder %s270, %s284
      %p286 = scmp.eq.s32.totalorder %s29, 0
      %p287 = por %p285, %p286
      %s289 = sadd.s32 %s288, 1
      %p292 = scmp.eq.s32.totalorder %s23, 3
      %p293 = scmp.ne.s32.totalorder %s288, %s290
      %p294 = scmp.eq.s32.totalorder %s23, 0
      %p295 = por %p293, %p294
      %p296 = scmp.ne.s32.totalorder %s288, %s290
      %p297 = scmp.eq.s32.totalorder %s28, 3
      %p298 = por %p296, %p297
      %p299 = scmp.ne.s32.totalorder %s290, %s291
      %p300 = scmp.eq.s32.totalorder %s28, 0
      %p301 = por %p299, %p300
      %p302 = scmp.ne.s32.totalorder %s290, %s291
      %p303 = scmp.eq.s32.totalorder %s29, 3
      %p304 = por %p302, %p303
      %p306 = scmp.ne.s32.totalorder %s291, %s305
      %p307 = scmp.eq.s32.totalorder %s29, 0
      %p308 = por %p306, %p307
      %s310 = sadd.s32 %s309, 1
      %p313 = scmp.eq.s32.totalorder %s23, 3
      %p314 = scmp.ne.s32.totalorder %s309, %s311
      %p315 = scmp.eq.s32.totalorder %s23, 0
      %p316 = por %p314, %p315
      %p317 = scmp.ne.s32.totalorder %s309, %s311
      %p318 = scmp.eq.s32.totalorder %s28, 3
      %p319 = por %p317, %p318
      %p320 = scmp.ne.s32.totalorder %s311, %s312
      %p321 = scmp.eq.s32.totalorder %s28, 0
      %p322 = por %p320, %p321
      %p323 = scmp.ne.s32.totalorder %s311, %s312
      %p324 = scmp.eq.s32.totalorder %s29, 3
      %p325 = por %p323, %p324
      %p327 = scmp.ne.s32.totalorder %s312, %s326
      %p328 = scmp.eq.s32.totalorder %s29, 0
      %p329 = por %p327, %p328
      %s331 = sadd.s32 %s330, 1
      %p334 = scmp.eq.s32.totalorder %s23, 3
      %p335 = scmp.ne.s32.totalorder %s330, %s332
      %p336 = scmp.eq.s32.totalorder %s23, 0
      %p337 = por %p335, %p336
      %p338 = scmp.ne.s32.totalorder %s330, %s332
      %p339 = scmp.eq.s32.totalorder %s28, 3
      %p340 = por %p338, %p339
      %p341 = scmp.ne.s32.totalorder %s332, %s333
      %p342 = scmp.eq.s32.totalorder %s28, 0
      %p343 = por %p341, %p342
      %p344 = scmp.ne.s32.totalorder %s332, %s333
      %p345 = scmp.eq.s32.totalorder %s29, 3
      %p346 = por %p344, %p345
      %p348 = scmp.ne.s32.totalorder %s333, %s347
      %p349 = scmp.eq.s32.totalorder %s29, 0
      %p350 = por %p348, %p349
      %s352 = sadd.s32 %s351, 1
      %p355 = scmp.eq.s32.totalorder %s23, 3
      %p356 = scmp.ne.s32.totalorder %s351, %s353
      %p357 = scmp.eq.s32.totalorder %s23, 0
      %p358 = por %p356, %p357
      %p359 = scmp.ne.s32.totalorder %s351, %s353
      %p360 = scmp.eq.s32.totalorder %s28, 3
      %p361 = por %p359, %p360
      %p362 = scmp.ne.s32.totalorder %s353, %s354
      %p363 = scmp.eq.s32.totalorder %s28, 0
      %p364 = por %p362, %p363
      %p365 = scmp.ne.s32.totalorder %s353, %s354
      %p366 = scmp.eq.s32.totalorder %s29, 3
      %p367 = por %p365, %p366
      %p369 = scmp.ne.s32.totalorder %s354, %s368
      %p370 = scmp.eq.s32.totalorder %s29, 0
      %p371 = por %p369, %p370
      %p372 = scmp.le.s32.totalorder 1, %s23
      %p373 = scmp.lt.s32.totalorder %s23, 5
      %p374 = pnand %p372, %p373
      %p375 = pneg %p374
      // Predicated region
      $region9: #{kernel_encoder_layer.1} parent=5 // pred_check
        _
      $region10: #{kernel_encoder_layer.1} parent=5 // pred_check_branch
        %377 = sbr.rel (%p374) target = $region12
      $region11: #{kernel_encoder_layer.1} parent=5 // pred_region
        %s378 = ssub.s32 %s23, 1
        // Predicated region
        $region13: #{kernel_encoder_layer.1} parent=11 // pred_check
          %p379 = pneg %p44
        $region14: #{kernel_encoder_layer.1} parent=11 // pred_check_branch
          %381 = sbr.rel (%p379) target = $region16
        $region15: #{kernel_encoder_layer.1} parent=11 // pred_region
          %383 = vsyncadd [#allocation4], 0
          %s384 = sshll.u32 %s0, 4
          %s385 = int_to_ptr.vmem [resolvable:$true] %s384
          %390 = dma.vmem_to_smem %s385, 256, [#allocation2], [#allocation4], 128, 128, 8
        $region16: #{kernel_encoder_layer.1} parent=11 // pred_fallthru
          _
        // Predicated region
        $region17: #{kernel_encoder_layer.1} parent=11 // pred_check
          %p391 = pneg %p65
        $region18: #{kernel_encoder_layer.1} parent=11 // pred_check_branch
          %393 = sbr.rel (%p391) target = $region20
        $region19: #{kernel_encoder_layer.1} parent=11 // pred_region
          _
        $region20: #{kernel_encoder_layer.1} parent=11 // pred_fallthru
          _
        // Predicated region
        $region21: #{kernel_encoder_layer.1} parent=11 // pred_check
          %p394 = pneg %p86
        $region22: #{kernel_encoder_layer.1} parent=11 // pred_check_branch
          %396 = sbr.rel (%p394) target = $region24
        $region23: #{kernel_encoder_layer.1} parent=11 // pred_region
          _
        $region24: #{kernel_encoder_layer.1} parent=11 // pred_fallthru
          _
        // Predicated region
        $region25: #{kernel_encoder_layer.1} parent=11 // pred_check
          %p397 = pneg %p107
        $region26: #{kernel_encoder_layer.1} parent=11 // pred_check_branch
          %399 = sbr.rel (%p397) target = $region28
        $region27: #{kernel_encoder_layer.1} parent=11 // pred_region
          _
        $region28: #{kernel_encoder_layer.1} parent=11 // pred_fallthru
          _
        // Predicated region
        $region29: #{kernel_encoder_layer.1} parent=11 // pred_check
          %p400 = pneg %p128
        $region30: #{kernel_encoder_layer.1} parent=11 // pred_check_branch
          %402 = sbr.rel (%p400) target = $region32
        $region31: #{kernel_encoder_layer.1} parent=11 // pred_region
          _
        $region32: #{kernel_encoder_layer.1} parent=11 // pred_fallthru
          _
        // Predicated region
        $region33: #{kernel_encoder_layer.1} parent=11 // pred_check
          %p403 = pneg %p149
        $region34: #{kernel_encoder_layer.1} parent=11 // pred_check_branch
          %405 = sbr.rel (%p403) target = $region36
        $region35: #{kernel_encoder_layer.1} parent=11 // pred_region
          _
        $region36: #{kernel_encoder_layer.1} parent=11 // pred_fallthru
          _
        // Predicated region
        $region37: #{kernel_encoder_layer.1} parent=11 // pred_check
          %p406 = pneg %p196
        $region38: #{kernel_encoder_layer.1} parent=11 // pred_check_branch
          %408 = sbr.rel (%p406) target = $region40
        $region39: #{kernel_encoder_layer.1} parent=11 // pred_region
          _
        $region40: #{kernel_encoder_layer.1} parent=11 // pred_fallthru
          _
        // Predicated region
        $region41: #{kernel_encoder_layer.1} parent=11 // pred_check
          %p409 = pneg %p217
        $region42: #{kernel_encoder_layer.1} parent=11 // pred_check_branch
          %411 = sbr.rel (%p409) target = $region44
        $region43: #{kernel_encoder_layer.1} parent=11 // pred_region
          _
        $region44: #{kernel_encoder_layer.1} parent=11 // pred_fallthru
          _
        // Predicated region
        $region45: #{kernel_encoder_layer.1} parent=11 // pred_check
          %p412 = pneg %p238
        $region46: #{kernel_encoder_layer.1} parent=11 // pred_check_branch
          %414 = sbr.rel (%p412) target = $region48
        $region47: #{kernel_encoder_layer.1} parent=11 // pred_region
          _
        $region48: #{kernel_encoder_layer.1} parent=11 // pred_fallthru
          _
        // Predicated region
        $region49: #{kernel_encoder_layer.1} parent=11 // pred_check
          %p415 = pneg %p259
        $region50: #{kernel_encoder_layer.1} parent=11 // pred_check_branch
          %417 = sbr.rel (%p415) target = $region52
        $region51: #{kernel_encoder_layer.1} parent=11 // pred_region
          _
        $region52: #{kernel_encoder_layer.1} parent=11 // pred_fallthru
          _
        // Predicated region
        $region53: #{kernel_encoder_layer.1} parent=11 // pred_check
          %p418 = pneg %p280
        $region54: #{kernel_encoder_layer.1} parent=11 // pred_check_branch
          %420 = sbr.rel (%p418) target = $region56
        $region55: #{kernel_encoder_layer.1} parent=11 // pred_region
          _
        $region56: #{kernel_encoder_layer.1} parent=11 // pred_fallthru
          _
        // Predicated region
        $region57: #{kernel_encoder_layer.1} parent=11 // pred_check
          %p421 = pneg %p301
        $region58: #{kernel_encoder_layer.1} parent=11 // pred_check_branch
          %423 = sbr.rel (%p421) target = $region60
        $region59: #{kernel_encoder_layer.1} parent=11 // pred_region
          _
        $region60: #{kernel_encoder_layer.1} parent=11 // pred_fallthru
          _
        // Predicated region
        $region61: #{kernel_encoder_layer.1} parent=11 // pred_check
          %p424 = pneg %p322
        $region62: #{kernel_encoder_layer.1} parent=11 // pred_check_branch
          %426 = sbr.rel (%p424) target = $region64
        $region63: #{kernel_encoder_layer.1} parent=11 // pred_region
          _
        $region64: #{kernel_encoder_layer.1} parent=11 // pred_fallthru
          _
        // Predicated region
        $region65: #{kernel_encoder_layer.1} parent=11 // pred_check
          %p427 = pneg %p343
        $region66: #{kernel_encoder_layer.1} parent=11 // pred_check_branch
          %429 = sbr.rel (%p427) target = $region68
        $region67: #{kernel_encoder_layer.1} parent=11 // pred_region
          _
        $region68: #{kernel_encoder_layer.1} parent=11 // pred_fallthru
          _
      $region12: #{kernel_encoder_layer.1} parent=5 // pred_fallthru
        _
      %p430 = scmp.lt.s32.totalorder %s23, 4
      // Predicated region
      $region69: #{kernel_encoder_layer.1} parent=5 // pred_check
        %p431 = pneg %p430
      $region70: #{kernel_encoder_layer.1} parent=5 // pred_check_branch
        %433 = sbr.rel (%p431) target = $region72
      $region71: #{kernel_encoder_layer.1} parent=5 // pred_region
        // Predicated region
        $region73: #{kernel_encoder_layer.1} parent=71 // pred_check
          %p434 = pneg %p169
        $region74: #{kernel_encoder_layer.1} parent=71 // pred_check_branch
          %436 = sbr.rel (%p434) target = $region76
        $region75: #{kernel_encoder_layer.1} parent=71 // pred_region
          %s437 = smul.u32 4, %s23
          %p438 = scmp.lt.s32.totalorder %s437, 15
          %s439 = scalar_select %p438, %s437, 15
          %s440 = smul.addr %s439, 8
          %s441 = scalar_lea.vmem %s6, %s440
          %s442 = smul.u32 4, %s23
        $region76: #{kernel_encoder_layer.1} parent=71 // pred_fallthru
          _
      $region72: #{kernel_encoder_layer.1} parent=5 // pred_fallthru
        _
      %p443 = scmp.le.s32.totalorder 1, %s23
      %p444 = scmp.lt.s32.totalorder %s23, 5
      %p445 = pnand %p443, %p444
      %p446 = pneg %p445
      // Predicated region
      $region77: #{kernel_encoder_layer.1} parent=5 // pred_check
        _
      $region78: #{kernel_encoder_layer.1} parent=5 // pred_check_branch
        %448 = sbr.rel (%p445) target = $region80
      $region79: #{kernel_encoder_layer.1} parent=5 // pred_region
        %s449 = ssub.s32 %s23, 1
        // Predicated region
        $region81: #{kernel_encoder_layer.1} parent=79 // pred_check
          %p450 = pneg %p44
        $region82: #{kernel_encoder_layer.1} parent=79 // pred_check_branch
          %452 = sbr.rel (%p450) target = $region84
        $region83: #{kernel_encoder_layer.1} parent=79 // pred_region
          %454 = dma.done [#allocation4], 256
        $region84: #{kernel_encoder_layer.1} parent=79 // pred_fallthru
          _
        %455 = sfence
        %p456 = pneg %p44
        %p457 = pneg %p41
        %p458 = pneg %p65
        %p459 = pneg %p62
        %p460 = pneg %p86
        %p461 = pneg %p83
        %p462 = pneg %p107
        %p463 = pneg %p104
        %p464 = pneg %p128
        %p465 = pneg %p125
        %p466 = pneg %p149
        %p467 = pneg %p146
        %s468 = smul.u32 4, %s28
        %p469 = scmp.lt.s32.totalorder %s468, 15
        %s470 = scalar_select %p469, %s468, 15
        %s471 = smul.addr %s470, 8
        %s472 = scalar_lea.vmem %s6, %s471
        %p473 = pneg %p175
        %p474 = pneg %p172
        %p475 = pneg %p196
        %p476 = pneg %p193
        %p477 = pneg %p217
        %p478 = pneg %p214
        %p479 = pneg %p238
        %p480 = pneg %p235
        %p481 = pneg %p259
        %p482 = pneg %p256
        %p483 = pneg %p280
        %p484 = pneg %p277
        %p485 = pneg %p301
        %p486 = pneg %p298
        %p487 = pneg %p322
        %p488 = pneg %p319
        %p489 = pneg %p343
        %p490 = pneg %p340
        %p491 = pneg %p364
        %p492 = pneg %p361
        %s493 = smul.u32 4, %s28
        %p494 = scmp.lt.s32.totalorder %s493, 15
        %s495 = scalar_select %p494, %s493, 15
        %s496 = smul.addr %s495, 8
        %s497 = scalar_lea.vmem %s6, %s496
        %s498 = smul.u32 4, %s28
        %p499 = scmp.eq.s32.totalorder %s28, 0
        // Predicated region
        $region85: #{kernel_encoder_layer.1} parent=79 // pred_check
          %p500 = pneg %p499
        $region86: #{kernel_encoder_layer.1} parent=79 // pred_check_branch
          %502 = sbr.rel (%p500) target = $region88
        $region87: #{kernel_encoder_layer.1} parent=79 // pred_region
          %vm503 = vcmask 130048
          %504 = vst.msk [vmem:[#allocation5] sm:$0xff] %vm503, 0.0
        $region88: #{kernel_encoder_layer.1} parent=79 // pred_fallthru
          _
        %v505 = vld [vmem:[%s1] sm:$0xff]
        %v506 = vld [vmem:[%s1 + $0x8] sm:$0xff]
        %v507 = vld [vmem:[%s2] sm:$0x1]
        %v508 = vld [vmem:[%s2 + $0x1] sm:$0x1]
        %v509 = vld [vmem:[%s3] sm:$0xff]
        %v510 = vld [vmem:[%s3 + $0x8] sm:$0xff]
        %v511 = vld [vmem:[%s4] sm:$0x1]
        %512 = vset.pattern.permute.xlu0 0
        %513 = vperm.xlu0 %512, %v509
        %v514 = vpop.permute.xlu0 %513
        %515 = vset.pattern.permute.xlu0 0
        %516 = vperm.xlu0 %515, %v510
        %v517 = vpop.permute.xlu0 %516
        %v518 = vperm.slane %v511, 0
        %vm519 = vcmp.eq.s32.totalorder %v514, %v518
        %vm520 = vcmp.eq.s32.totalorder %v517, %v518
        %v521 = vld [vmem:[%s5] sm:$0xff]
        %s522 = smul.u32 %s28, 4
        %s523 = smul.u32 %s522, 128
        %s524 = sld [smem:[#allocation2 + %s523]]
        %s525 = sadd.s32 %s523, 1
        %s526 = sld [smem:[#allocation2 + %s525]]
        %v527 = vstv %s524
        %v528 = vadd.f32 %v505, %v527
        %v529 = vadd.f32 %v506, %v527
        %531 = vset.pattern.permute.xlu0 0
        %532 = vperm.xlu0 %531, %v528
        %v533 = vpop.permute.xlu0 %532
        %536 = vset.pattern.permute.xlu0 0
        %537 = vperm.xlu0 %536, %v529
        %v538 = vpop.permute.xlu0 %537
        %v540 = vperm.slane %v507, 0
        %v541 = vsub.f32 %v533, %v540
        %v542 = vsub.f32 %v538, %v540
        %v543 = vstv %s526
        %v544 = vadd.f32 %v505, %v543
        %v545 = vadd.f32 %v506, %v543
        %547 = vset.pattern.permute.xlu0 1
        %548 = vperm.xlu0 %547, %v544
        %v549 = vpop.permute.xlu0 %548
        %552 = vset.pattern.permute.xlu0 1
        %553 = vperm.xlu0 %552, %v545
        %v554 = vpop.permute.xlu0 %553
        %v556 = vperm.slane %v508, 0
        %v557 = vsub.f32 %v549, %v556
        %v558 = vsub.f32 %v554, %v556
        %v559 = vmul.f32 %v541, %v541
        %v560 = vmul.f32 %v542, %v542
        %v561 = vmul.f32 %v557, %v557
        %v562 = vmul.f32 %v558, %v558
        %v563 = vadd.f32 %v559, %v561
        %v564 = vadd.f32 %v560, %v562
        %v565 = vsub.f32 0.0, %v563
        %v566 = vsub.f32 0.0, %v564
        %v567 = vmul.f32 %v565, 2.0
        %v568 = vmul.f32 %v566, 2.0
        %v569 = vmul.f32 %v567, 1.442695
        %v570 = vpow.pop %v569
        %v571 = vmul.f32 %v568, 1.442695
        %v572 = vpow.pop %v571
        %v573 = vsel %vm519, %v570, 0.0
        %v574 = vsel %vm520, %v572, 0.0
        %v575 = vld [vmem:[%s497] sm:$0xff]
        %vm576 = vcmask 64512
        %v578 = vsel %vm576, %v575, 0
        %580 = vmatpush.msra.mxu0 0.0
        %581 = vmatpush.msra.mxu0 0.0
        %582 = vmatpush.msra.mxu0 0.0
        %583 = vmatpush.msra.mxu0 0.0
        %584 = vmatpush.msra.mxu0 0.0
        %585 = vmatpush.msra.mxu0 0.0
        %586 = vmatpush.msra.mxu0 0.0
        %587 = vmatpush.msra.mxu0 0.0
        %588 = vmatpush.msra.mxu0 0.0
        %589 = vmatpush.msra.mxu0 0.0
        %590 = vmatpush.msra.mxu0 0.0
        %591 = vmatpush.msra.mxu0 0.0
        %592 = vmatpush.msra.mxu0 0.0
        %593 = vmatpush.msra.mxu0 0.0
        %594 = vmatpush.msra.mxu0 0.0
        %595 = vmatpush.msra.mxu0 %v521
        %596 = vmatmul.f32.gmra.mxu0 %v578
        %v597 = vpop.f32.mrf.mxu0
        %v598 = vadd.f32 0.0, %v597
        %599 = vdwg.mxu0
        %s600 = sadd.s32 %s522, 1
        %s601 = smul.u32 %s600, 128
        %s602 = sld [smem:[#allocation2 + %s601]]
        %s603 = sadd.s32 %s601, 1
        %s604 = sld [smem:[#allocation2 + %s603]]
        %v605 = vstv %s602
        %v606 = vadd.f32 %v505, %v605
        %v607 = vadd.f32 %v506, %v605
        %609 = vset.pattern.permute.xlu0 0
        %610 = vperm.xlu0 %609, %v606
        %v611 = vpop.permute.xlu0 %610
        %614 = vset.pattern.permute.xlu0 0
        %615 = vperm.xlu0 %614, %v607
        %v616 = vpop.permute.xlu0 %615
        %v618 = vsub.f32 %v611, %v540
        %v619 = vsub.f32 %v616, %v540
        %v620 = vstv %s604
        %v621 = vadd.f32 %v505, %v620
        %v622 = vadd.f32 %v506, %v620
        %624 = vset.pattern.permute.xlu0 1
        %625 = vperm.xlu0 %624, %v621
        %v626 = vpop.permute.xlu0 %625
        %629 = vset.pattern.permute.xlu0 1
        %630 = vperm.xlu0 %629, %v622
        %v631 = vpop.permute.xlu0 %630
        %v633 = vsub.f32 %v626, %v556
        %v634 = vsub.f32 %v631, %v556
        %v635 = vmul.f32 %v618, %v618
        %v636 = vmul.f32 %v619, %v619
        %v637 = vmul.f32 %v633, %v633
        %v638 = vmul.f32 %v634, %v634
        %v639 = vadd.f32 %v635, %v637
        %v640 = vadd.f32 %v636, %v638
        %v641 = vsub.f32 0.0, %v639
        %v642 = vsub.f32 0.0, %v640
        %v643 = vmul.f32 %v641, 2.0
        %v644 = vmul.f32 %v642, 2.0
        %v645 = vmul.f32 %v643, 1.442695
        %v646 = vpow.pop %v645
        %v647 = vmul.f32 %v644, 1.442695
        %v648 = vpow.pop %v647
        %v649 = vsel %vm519, %v646, 0.0
        %v650 = vsel %vm520, %v648, 0.0
        %s651 = scalar_lea.vmem %s497, 8
        %v652 = vld [vmem:[%s651] sm:$0xff]
        %v654 = vsel %vm576, %v652, 0
        %656 = vmatpush.msra.mxu0 0.0
        %657 = vmatpush.msra.mxu0 0.0
        %658 = vmatpush.msra.mxu0 0.0
        %659 = vmatpush.msra.mxu0 0.0
        %660 = vmatpush.msra.mxu0 0.0
        %661 = vmatpush.msra.mxu0 0.0
        %662 = vmatpush.msra.mxu0 0.0
        %663 = vmatpush.msra.mxu0 0.0
        %664 = vmatpush.msra.mxu0 0.0
        %665 = vmatpush.msra.mxu0 0.0
        %666 = vmatpush.msra.mxu0 0.0
        %667 = vmatpush.msra.mxu0 0.0
        %668 = vmatpush.msra.mxu0 0.0
        %669 = vmatpush.msra.mxu0 0.0
        %670 = vmatpush.msra.mxu0 0.0
        %671 = vmatpush.msra.mxu0 %v521
        %672 = vmatmul.f32.gmra.mxu0 %v654
        %v673 = vpop.f32.mrf.mxu0
        %v674 = vadd.f32 0.0, %v673
        %675 = vdwg.mxu0
        %vm676 = vcmask 130048
        %v678 = vsel %vm676, %v674, 0
        %680 = vmatpush.msra.mxu0 0.0
        %681 = vmatpush.msra.mxu0 0.0
        %682 = vmatpush.msra.mxu0 0.0
        %683 = vmatpush.msra.mxu0 0.0
        %684 = vmatpush.msra.mxu0 0.0
        %685 = vmatpush.msra.mxu0 0.0
        %686 = vmatpush.msra.mxu0 0.0
        %687 = vmatpush.msra.mxu0 0.0
        %688 = vmatpush.msra.mxu0 0.0
        %689 = vmatpush.msra.mxu0 0.0
        %690 = vmatpush.msra.mxu0 0.0
        %691 = vmatpush.msra.mxu0 0.0
        %692 = vmatpush.msra.mxu0 0.0
        %693 = vmatpush.msra.mxu0 0.0
        %694 = vmatpush.msra.mxu0 %v650
        %695 = vmatpush.msra.mxu0 %v649
        %696 = vmatmul.f32.gmra.mxu0 %v678
        %v697 = vpop.f32.mrf.mxu0
        %v698 = vadd.f32 0.0, %v697
        %699 = vdwg.mxu0
        %v701 = vsel %vm676, %v598, 0
        %703 = vmatpush.msra.mxu0 0.0
        %704 = vmatpush.msra.mxu0 0.0
        %705 = vmatpush.msra.mxu0 0.0
        %706 = vmatpush.msra.mxu0 0.0
        %707 = vmatpush.msra.mxu0 0.0
        %708 = vmatpush.msra.mxu0 0.0
        %709 = vmatpush.msra.mxu0 0.0
        %710 = vmatpush.msra.mxu0 0.0
        %711 = vmatpush.msra.mxu0 0.0
        %712 = vmatpush.msra.mxu0 0.0
        %713 = vmatpush.msra.mxu0 0.0
        %714 = vmatpush.msra.mxu0 0.0
        %715 = vmatpush.msra.mxu0 0.0
        %716 = vmatpush.msra.mxu0 0.0
        %717 = vmatpush.msra.mxu0 %v574
        %718 = vmatpush.msra.mxu0 %v573
        %719 = vmatmul.f32.gmra.mxu0 %v701
        %v720 = vpop.f32.mrf.mxu0
        %v721 = vadd.f32 %v698, %v720
        %722 = vdwg.mxu0
        %s723 = sadd.s32 %s522, 2
        %s724 = smul.u32 %s723, 128
        %s725 = sld [smem:[#allocation2 + %s724]]
        %s726 = sadd.s32 %s724, 1
        %s727 = sld [smem:[#allocation2 + %s726]]
        %v728 = vstv %s725
        %v729 = vadd.f32 %v505, %v728
        %v730 = vadd.f32 %v506, %v728
        %732 = vset.pattern.permute.xlu0 0
        %733 = vperm.xlu0 %732, %v729
        %v734 = vpop.permute.xlu0 %733
        %737 = vset.pattern.permute.xlu0 0
        %738 = vperm.xlu0 %737, %v730
        %v739 = vpop.permute.xlu0 %738
        %v741 = vsub.f32 %v734, %v540
        %v742 = vsub.f32 %v739, %v540
        %v743 = vstv %s727
        %v744 = vadd.f32 %v505, %v743
        %v745 = vadd.f32 %v506, %v743
        %747 = vset.pattern.permute.xlu0 1
        %748 = vperm.xlu0 %747, %v744
        %v749 = vpop.permute.xlu0 %748
        %752 = vset.pattern.permute.xlu0 1
        %753 = vperm.xlu0 %752, %v745
        %v754 = vpop.permute.xlu0 %753
        %v756 = vsub.f32 %v749, %v556
        %v757 = vsub.f32 %v754, %v556
        %v758 = vmul.f32 %v741, %v741
        %v759 = vmul.f32 %v742, %v742
        %v760 = vmul.f32 %v756, %v756
        %v761 = vmul.f32 %v757, %v757
        %v762 = vadd.f32 %v758, %v760
        %v763 = vadd.f32 %v759, %v761
        %v764 = vsub.f32 0.0, %v762
        %v765 = vsub.f32 0.0, %v763
        %v766 = vmul.f32 %v764, 2.0
        %v767 = vmul.f32 %v765, 2.0
        %v768 = vmul.f32 %v766, 1.442695
        %v769 = vpow.pop %v768
        %v770 = vmul.f32 %v767, 1.442695
        %v771 = vpow.pop %v770
        %v772 = vsel %vm519, %v769, 0.0
        %v773 = vsel %vm520, %v771, 0.0
        %s774 = scalar_lea.vmem %s497, 16
        %v775 = vld [vmem:[%s774] sm:$0xff]
        %v777 = vsel %vm576, %v775, 0
        %779 = vmatpush.msra.mxu0 0.0
        %780 = vmatpush.msra.mxu0 0.0
        %781 = vmatpush.msra.mxu0 0.0
        %782 = vmatpush.msra.mxu0 0.0
        %783 = vmatpush.msra.mxu0 0.0
        %784 = vmatpush.msra.mxu0 0.0
        %785 = vmatpush.msra.mxu0 0.0
        %786 = vmatpush.msra.mxu0 0.0
        %787 = vmatpush.msra.mxu0 0.0
        %788 = vmatpush.msra.mxu0 0.0
        %789 = vmatpush.msra.mxu0 0.0
        %790 = vmatpush.msra.mxu0 0.0
        %791 = vmatpush.msra.mxu0 0.0
        %792 = vmatpush.msra.mxu0 0.0
        %793 = vmatpush.msra.mxu0 0.0
        %794 = vmatpush.msra.mxu0 %v521
        %795 = vmatmul.f32.gmra.mxu0 %v777
        %v796 = vpop.f32.mrf.mxu0
        %v797 = vadd.f32 0.0, %v796
        %798 = vdwg.mxu0
        %v800 = vsel %vm676, %v797, 0
        %802 = vmatpush.msra.mxu0 0.0
        %803 = vmatpush.msra.mxu0 0.0
        %804 = vmatpush.msra.mxu0 0.0
        %805 = vmatpush.msra.mxu0 0.0
        %806 = vmatpush.msra.mxu0 0.0
        %807 = vmatpush.msra.mxu0 0.0
        %808 = vmatpush.msra.mxu0 0.0
        %809 = vmatpush.msra.mxu0 0.0
        %810 = vmatpush.msra.mxu0 0.0
        %811 = vmatpush.msra.mxu0 0.0
        %812 = vmatpush.msra.mxu0 0.0
        %813 = vmatpush.msra.mxu0 0.0
        %814 = vmatpush.msra.mxu0 0.0
        %815 = vmatpush.msra.mxu0 0.0
        %816 = vmatpush.msra.mxu0 %v773
        %817 = vmatpush.msra.mxu0 %v772
        %818 = vmatmul.f32.gmra.mxu0 %v800
        %v819 = vpop.f32.mrf.mxu0
        %v820 = vadd.f32 0.0, %v819
        %821 = vdwg.mxu0
        %v822 = vadd.f32 %v721, %v820
        %s823 = sadd.s32 %s522, 3
        %s824 = smul.u32 %s823, 128
        %s825 = sld [smem:[#allocation2 + %s824]]
        %s826 = sadd.s32 %s824, 1
        %s827 = sld [smem:[#allocation2 + %s826]]
        %v828 = vstv %s825
        %v829 = vadd.f32 %v505, %v828
        %v830 = vadd.f32 %v506, %v828
        %832 = vset.pattern.permute.xlu0 0
        %833 = vperm.xlu0 %832, %v829
        %v834 = vpop.permute.xlu0 %833
        %837 = vset.pattern.permute.xlu0 0
        %838 = vperm.xlu0 %837, %v830
        %v839 = vpop.permute.xlu0 %838
        %v841 = vsub.f32 %v834, %v540
        %v842 = vsub.f32 %v839, %v540
        %v843 = vstv %s827
        %v844 = vadd.f32 %v505, %v843
        %v845 = vadd.f32 %v506, %v843
        %847 = vset.pattern.permute.xlu0 1
        %848 = vperm.xlu0 %847, %v844
        %v849 = vpop.permute.xlu0 %848
        %852 = vset.pattern.permute.xlu0 1
        %853 = vperm.xlu0 %852, %v845
        %v854 = vpop.permute.xlu0 %853
        %v856 = vsub.f32 %v849, %v556
        %v857 = vsub.f32 %v854, %v556
        %v858 = vmul.f32 %v841, %v841
        %v859 = vmul.f32 %v842, %v842
        %v860 = vmul.f32 %v856, %v856
        %v861 = vmul.f32 %v857, %v857
        %v862 = vadd.f32 %v858, %v860
        %v863 = vadd.f32 %v859, %v861
        %v864 = vsub.f32 0.0, %v862
        %v865 = vsub.f32 0.0, %v863
        %v866 = vmul.f32 %v864, 2.0
        %v867 = vmul.f32 %v865, 2.0
        %v868 = vmul.f32 %v866, 1.442695
        %v869 = vpow.pop %v868
        %v870 = vmul.f32 %v867, 1.442695
        %v871 = vpow.pop %v870
        %v872 = vsel %vm519, %v869, 0.0
        %v873 = vsel %vm520, %v871, 0.0
        %s874 = scalar_lea.vmem %s497, 24
        %v875 = vld [vmem:[%s874] sm:$0xff]
        %v877 = vsel %vm576, %v875, 0
        %879 = vmatpush.msra.mxu0 0.0
        %880 = vmatpush.msra.mxu0 0.0
        %881 = vmatpush.msra.mxu0 0.0
        %882 = vmatpush.msra.mxu0 0.0
        %883 = vmatpush.msra.mxu0 0.0
        %884 = vmatpush.msra.mxu0 0.0
        %885 = vmatpush.msra.mxu0 0.0
        %886 = vmatpush.msra.mxu0 0.0
        %887 = vmatpush.msra.mxu0 0.0
        %888 = vmatpush.msra.mxu0 0.0
        %889 = vmatpush.msra.mxu0 0.0
        %890 = vmatpush.msra.mxu0 0.0
        %891 = vmatpush.msra.mxu0 0.0
        %892 = vmatpush.msra.mxu0 0.0
        %893 = vmatpush.msra.mxu0 0.0
        %894 = vmatpush.msra.mxu0 %v521
        %895 = vmatmul.f32.gmra.mxu0 %v877
        %v896 = vpop.f32.mrf.mxu0
        %v897 = vadd.f32 0.0, %v896
        %898 = vdwg.mxu0
        %v900 = vsel %vm676, %v897, 0
        %902 = vmatpush.msra.mxu0 0.0
        %903 = vmatpush.msra.mxu0 0.0
        %904 = vmatpush.msra.mxu0 0.0
        %905 = vmatpush.msra.mxu0 0.0
        %906 = vmatpush.msra.mxu0 0.0
        %907 = vmatpush.msra.mxu0 0.0
        %908 = vmatpush.msra.mxu0 0.0
        %909 = vmatpush.msra.mxu0 0.0
        %910 = vmatpush.msra.mxu0 0.0
        %911 = vmatpush.msra.mxu0 0.0
        %912 = vmatpush.msra.mxu0 0.0
        %913 = vmatpush.msra.mxu0 0.0
        %914 = vmatpush.msra.mxu0 0.0
        %915 = vmatpush.msra.mxu0 0.0
        %916 = vmatpush.msra.mxu0 %v873
        %917 = vmatpush.msra.mxu0 %v872
        %918 = vmatmul.f32.gmra.mxu0 %v900
        %v919 = vpop.f32.mrf.mxu0
        %v920 = vadd.f32 0.0, %v919
        %921 = vdwg.mxu0
        %v922 = vadd.f32 %v822, %v920
        %v923 = vld [vmem:[#allocation5] sm:$0xff]
        %v924 = vadd.f32 %v923, %v922
        %925 = vst.msk [vmem:[#allocation5] sm:$0xff] %vm676, %v924
        %p926 = scmp.eq.s32.totalorder %s28, 3
        // Predicated region
        $region89: #{kernel_encoder_layer.1} parent=79 // pred_check
          %p927 = pneg %p926
        $region90: #{kernel_encoder_layer.1} parent=79 // pred_check_branch
          %929 = sbr.rel (%p927) target = $region92
        $region91: #{kernel_encoder_layer.1} parent=79 // pred_region
          %v930 = vld [vmem:[#allocation5] sm:$0xff]
          %vm931 = vcmp.ge.f32.partialorder %v930, 0.0
          %v932 = vmul.f32 %v930, 0.01
          %v933 = vsel %vm931, %v930, %v932
          %v934 = vsel %vm676, %v933, 0.0
          %935 = vadd.xlane.f32.xlu0 %v934
          %v936 = vpop.xlane.xlu0 %935
          %v937 = vrcp.pop 16.0
          %v938 = vmul.f32 16.0, %v937
          %v939 = vsub.f32 1.0, %v938
          %v940 = vmul.f32 %v937, %v939
          %v941 = vadd.f32 %v937, %v940
          %vm942 = vweird.f32 %v937
          %v943 = vsel %vm942, %v937, %v941
          %v944 = vmul.f32 %v936, %v943
          %v945 = vsub.f32 %v933, %v944
          %v946 = vmul.f32 %v945, %v945
          %v947 = vsel %vm676, %v946, 0.0
          %948 = vadd.xlane.f32.xlu0 %v947
          %v949 = vpop.xlane.xlu0 %948
          %v950 = vmul.f32 %v949, %v943
          %v951 = vadd.f32 %v950, 1e-05
          %v952 = vrsqrt.pop %v951
          %v953 = vmul.f32 %v952, %v951
          %v954 = vmul.f32 %v953, %v952
          %v955 = vmul.f32 0.5, %v954
          %v956 = vsub.f32 1.5, %v955
          %v957 = vmul.f32 %v952, %v956
          %vm958 = vweird.f32 %v951
          %vm959 = vweird.f32 %v952
          %vm960 = vmor %vm958, %vm959
          %v961 = vsel %vm960, %v952, %v957
          %v962 = vmul.f32 %v945, %v961
          %v963 = vld [vmem:[%s7] sm:$0xff]
          %965 = vset.pattern.permute.xlu0 0
          %966 = vperm.xlu0 %965, %v963
          %v967 = vpop.permute.xlu0 %966
          %v969 = vmul.f32 %v962, %v967
          %v970 = vld [vmem:[%s8] sm:$0xff]
          %972 = vset.pattern.permute.xlu0 0
          %973 = vperm.xlu0 %972, %v970
          %v974 = vpop.permute.xlu0 %973
          %v976 = vadd.f32 %v969, %v974
          %v977 = vadd.f32 %v976, %v521
          %v978 = vld [vmem:[%s9] sm:$0xff]
          %v979 = vld [vmem:[%s9 + $0x8] sm:$0xff]
          %v980 = vld [vmem:[%s10] sm:$0xff]
          %v981 = vld [vmem:[%s10 + $0x8] sm:$0xff]
          %983 = vset.pattern.permute.xlu0 0
          %984 = vperm.xlu0 %983, %v980
          %v985 = vpop.permute.xlu0 %984
          %988 = vset.pattern.permute.xlu0 0
          %989 = vperm.xlu0 %988, %v981
          %v990 = vpop.permute.xlu0 %989
          %v993 = vsel %vm576, %v978, 0
          %v996 = vsel %vm576, %v979, 0
          %998 = vmatpush.msra.mxu0 0.0
          %999 = vmatpush.msra.mxu0 0.0
          %1000 = vmatpush.msra.mxu0 0.0
          %1001 = vmatpush.msra.mxu0 0.0
          %1002 = vmatpush.msra.mxu0 0.0
          %1003 = vmatpush.msra.mxu0 0.0
          %1004 = vmatpush.msra.mxu0 0.0
          %1005 = vmatpush.msra.mxu0 0.0
          %1006 = vmatpush.msra.mxu0 0.0
          %1007 = vmatpush.msra.mxu0 0.0
          %1008 = vmatpush.msra.mxu0 0.0
          %1009 = vmatpush.msra.mxu0 0.0
          %1010 = vmatpush.msra.mxu0 0.0
          %1011 = vmatpush.msra.mxu0 0.0
          %1012 = vmatpush.msra.mxu0 0.0
          %1013 = vmatpush.msra.mxu0 %v977
          %1014 = vmatmul.f32.gmra.mxu0 %v993
          %v1015 = vpop.f32.mrf.mxu0
          %v1016 = vadd.f32 %v985, %v1015
          %1017 = vmatmul.f32.gmra.mxu0 %v996
          %v1018 = vpop.f32.mrf.mxu0
          %v1019 = vadd.f32 %v990, %v1018
          %1020 = vdwg.mxu0
          %vm1021 = vcmp.ge.f32.partialorder %v1016, 0.0
          %vm1022 = vcmp.ge.f32.partialorder %v1019, 0.0
          %v1023 = vmul.f32 %v1016, 0.01
          %v1024 = vmul.f32 %v1019, 0.01
          %v1025 = vsel %vm1021, %v1016, %v1023
          %v1026 = vsel %vm1022, %v1019, %v1024
          %v1027 = vsel %vm676, %v1025, 0.0
          %1028 = vadd.xlane.f32.xlu0 %v1027
          %v1029 = vpop.xlane.xlu0 %1028
          %v1030 = vsel %vm676, %v1026, 0.0
          %1031 = vadd.xlane.f32.xlu0 %v1030
          %v1032 = vpop.xlane.xlu0 %1031
          %v1033 = vmul.f32 %v1029, %v943
          %v1034 = vmul.f32 %v1032, %v943
          %v1035 = vsub.f32 %v1025, %v1033
          %v1036 = vsub.f32 %v1026, %v1034
          %v1037 = vmul.f32 %v1035, %v1035
          %v1038 = vmul.f32 %v1036, %v1036
          %v1039 = vsel %vm676, %v1037, 0.0
          %1040 = vadd.xlane.f32.xlu0 %v1039
          %v1041 = vpop.xlane.xlu0 %1040
          %v1042 = vsel %vm676, %v1038, 0.0
          %1043 = vadd.xlane.f32.xlu0 %v1042
          %v1044 = vpop.xlane.xlu0 %1043
          %v1045 = vmul.f32 %v1041, %v943
          %v1046 = vmul.f32 %v1044, %v943
          %v1047 = vadd.f32 %v1045, 1e-05
          %v1048 = vadd.f32 %v1046, 1e-05
          %v1049 = vrsqrt.pop %v1047
          %v1050 = vmul.f32 %v1049, %v1047
          %v1051 = vmul.f32 %v1050, %v1049
          %v1052 = vmul.f32 0.5, %v1051
          %v1053 = vsub.f32 1.5, %v1052
          %v1054 = vmul.f32 %v1049, %v1053
          %vm1055 = vweird.f32 %v1047
          %vm1056 = vweird.f32 %v1049
          %vm1057 = vmor %vm1055, %vm1056
          %v1058 = vsel %vm1057, %v1049, %v1054
          %v1059 = vrsqrt.pop %v1048
          %v1060 = vmul.f32 %v1059, %v1048
          %v1061 = vmul.f32 %v1060, %v1059
          %v1062 = vmul.f32 0.5, %v1061
          %v1063 = vsub.f32 1.5, %v1062
          %v1064 = vmul.f32 %v1059, %v1063
          %vm1065 = vweird.f32 %v1048
          %vm1066 = vweird.f32 %v1059
          %vm1067 = vmor %vm1065, %vm1066
          %v1068 = vsel %vm1067, %v1059, %v1064
          %v1069 = vmul.f32 %v1035, %v1058
          %v1070 = vmul.f32 %v1036, %v1068
          %v1071 = vld [vmem:[%s11] sm:$0xff]
          %v1072 = vld [vmem:[%s11 + $0x8] sm:$0xff]
          %1074 = vset.pattern.permute.xlu0 0
          %1075 = vperm.xlu0 %1074, %v1071
          %v1076 = vpop.permute.xlu0 %1075
          %1079 = vset.pattern.permute.xlu0 0
          %1080 = vperm.xlu0 %1079, %v1072
          %v1081 = vpop.permute.xlu0 %1080
          %v1083 = vmul.f32 %v1069, %v1076
          %v1084 = vmul.f32 %v1070, %v1081
          %v1085 = vld [vmem:[%s12] sm:$0xff]
          %v1086 = vld [vmem:[%s12 + $0x8] sm:$0xff]
          %1088 = vset.pattern.permute.xlu0 0
          %1089 = vperm.xlu0 %1088, %v1085
          %v1090 = vpop.permute.xlu0 %1089
          %1093 = vset.pattern.permute.xlu0 0
          %1094 = vperm.xlu0 %1093, %v1086
          %v1095 = vpop.permute.xlu0 %1094
          %v1097 = vadd.f32 %v1083, %v1090
          %v1098 = vadd.f32 %v1084, %v1095
          %v1099 = vld [vmem:[%s13] sm:$0xff]
          %v1100 = vld [vmem:[%s14] sm:$0xff]
          %1102 = vset.pattern.permute.xlu0 0
          %1103 = vperm.xlu0 %1102, %v1100
          %v1104 = vpop.permute.xlu0 %1103
          %v1107 = vsel %vm676, %v1099, 0
          %1109 = vmatpush.msra.mxu0 0.0
          %1110 = vmatpush.msra.mxu0 0.0
          %1111 = vmatpush.msra.mxu0 0.0
          %1112 = vmatpush.msra.mxu0 0.0
          %1113 = vmatpush.msra.mxu0 0.0
          %1114 = vmatpush.msra.mxu0 0.0
          %1115 = vmatpush.msra.mxu0 0.0
          %1116 = vmatpush.msra.mxu0 0.0
          %1117 = vmatpush.msra.mxu0 0.0
          %1118 = vmatpush.msra.mxu0 0.0
          %1119 = vmatpush.msra.mxu0 0.0
          %1120 = vmatpush.msra.mxu0 0.0
          %1121 = vmatpush.msra.mxu0 0.0
          %1122 = vmatpush.msra.mxu0 0.0
          %1123 = vmatpush.msra.mxu0 %v1098
          %1124 = vmatpush.msra.mxu0 %v1097
          %1125 = vmatmul.f32.gmra.mxu0 %v1107
          %v1126 = vpop.f32.mrf.mxu0
          %v1127 = vadd.f32 %v1104, %v1126
          %1128 = vdwg.mxu0
          %v1129 = vadd.f32 %v977, %v1127
          %1130 = vst.msk [vmem:[#allocation5] sm:$0xff] %vm676, %v1129
        $region92: #{kernel_encoder_layer.1} parent=79 // pred_fallthru
          _
        // Predicated region
        $region93: #{kernel_encoder_layer.1} parent=79 // pred_check
          %p1131 = pneg %p361
        $region94: #{kernel_encoder_layer.1} parent=79 // pred_check_branch
          %1133 = sbr.rel (%p1131) target = $region96
        $region95: #{kernel_encoder_layer.1} parent=79 // pred_region
          %1135 = vsyncadd [#allocation3], 0
          %s1137 = sshll.u32 [#allocation5], 4
          %s1138 = int_to_ptr.vmem [resolvable:$true] %s1137
          %s1139 = sshll.u32 %s15, 4
          %s1140 = int_to_ptr.hbm [resolvable:$true] %s1139
          %1142 = dma.vmem_to_hbm [thread:$0]  %s1138, 128, %s1140, [#allocation3]
        $region96: #{kernel_encoder_layer.1} parent=79 // pred_fallthru
          _
        // Predicated region
        $region97: #{kernel_encoder_layer.1} parent=79 // pred_check
          %p1143 = pneg %p361
        $region98: #{kernel_encoder_layer.1} parent=79 // pred_check_branch
          %1145 = sbr.rel (%p1143) target = $region100
        $region99: #{kernel_encoder_layer.1} parent=79 // pred_region
          %1147 = dma.done [#allocation3], 128
        $region100: #{kernel_encoder_layer.1} parent=79 // pred_fallthru
          _
      $region80: #{kernel_encoder_layer.1} parent=5 // pred_fallthru
        _
      %p1148 = scmp.le.s32.totalorder 2, %s23
      // Predicated region
      $region101: #{kernel_encoder_layer.1} parent=5 // pred_check
        %p1149 = pneg %p1148
      $region102: #{kernel_encoder_layer.1} parent=5 // pred_check_branch
        %1151 = sbr.rel (%p1149) target = $region104
      $region103: #{kernel_encoder_layer.1} parent=5 // pred_region
        %s1152 = ssub.s32 %s23, 2
      $region104: #{kernel_encoder_layer.1} parent=5 // pred_fallthru
        _
    $region6: #{kernel_encoder_layer.1} parent=1 // loop_footer
      %s27 = sadd.s32 1, %s23
    $region7: #{kernel_encoder_layer.1} parent=1 // loop_footer_branch
      %22 = sbr.rel target = $region3
    $region8: #{kernel_encoder_layer.1} parent=1 // loop_exit
      _
    %1153 = vsyncpa [#allocation3], 1
    %s1154 = scalar_lea.sflag [#allocation3], 1
    %1155 = vsyncpa %s1154, 1
    %1156 = vsyncpa [#allocation4], 1
    %s1157 = scalar_lea.sflag [#allocation4], 1
    %1158 = vsyncpa %s1157, 1

</llo_original>
